<compile_context>
chip_gen: v7x
topology: tpu7x:2x2x1
jax: 0.10.0
libtpu: 0.0.40
codegen_flags: <defaults>
</compile_context>

<pallas_src>
import functools
import numpy as np
import jax
import jax.numpy as jnp
from jax.experimental import pallas as pl
from jax.experimental.pallas import tpu as pltpu

# ------------------------- model configuration (small) ----------------------
ONE_STEP_OBS = 45
NUM_ACTOR_OBS = 45
NUM_DATASET = 8
D_IN = NUM_ACTOR_OBS * 3 + NUM_DATASET          # 143  (encoder input dim)
D_IN_PAD = 256                                  # x zero-padded to 2 vregs wide
Z_LENGTH = 32
FSQ_LEVELS = (8, 6, 5)
N_LEVELS = len(FSQ_LEVELS)
ENC_HIDDEN = (64, 32)
DEC_HIDDEN = (32, 32)
BOT_PROP_EMBED = 32
NUM_ACTIONS = 12
BATCH = 16
LANES = 128

# packed-output lane layout: [ dec(12) | quant(32) | idx(1) | zeros ]
DEC_LO, DEC_HI = 0, NUM_ACTIONS
Q_LO, Q_HI = NUM_ACTIONS, NUM_ACTIONS + Z_LENGTH
IDX_COL = Q_HI                                   # lane 44

# ----------------------------- slab row layout -------------------------------
_W_BLOCKS = [("ew0", D_IN_PAD), ("ew1", 128), ("ew2", 128), ("pin", 128),
             ("pout", 128), ("ow", D_IN_PAD), ("dw0z", 128), ("dw0o", 128),
             ("dw1", 128), ("dw2", 128)]
W_OFF = {}
_row = 0
for _name, _rows in _W_BLOCKS:
    W_OFF[_name] = _row
    _row += _rows
W_ROWS = _row                                    # 1536 (all offsets 128-aligned)

(B_EB0, B_EB1, B_EB2, B_PINB, B_POUTB, B_OB, B_DB0, B_DB1, B_DB2,
 B_SHIFT, B_HALFL, B_OFFSET, B_INVHALFW) = range(13)
B_ROWS = 16


def _elu(x):
    # nn.ELU(alpha=1):  x if x > 0 else exp(x) - 1    (elu(0) == 0, padding-safe)
    return jnp.where(x > 0, x, jnp.exp(jnp.minimum(x, 0.0)) - 1.0)


# ------------------------------- Pallas kernel ------------------------------
def fsqvae_forward_kernel(x_ref, w_ref, b_ref, out_ref):
    f32 = jnp.float32

    def dot(a, name, rows):
        return jnp.dot(a, w_ref[pl.ds(W_OFF[name], rows), :],
                       preferred_element_type=f32)

    def bias(i):
        return b_ref[pl.ds(i, 1), :]                       # (1, 128) broadcast row

    x = x_ref[...]                                         # (TB, 256), lanes >=143 are 0

    # ----- encoder MLP (Linear + ELU, Linear + ELU, Linear) -----
    h = _elu(dot(x, "ew0", D_IN_PAD) + bias(B_EB0))
    h = _elu(dot(h, "ew1", 128) + bias(B_EB1))
    z_e = dot(h, "ew2", 128) + bias(B_EB2)

    # ----- FSQ quantization (project_in, bound+round, project_out) -----
    z = dot(z_e, "pin", 128) + bias(B_PINB)
    bounded = jnp.tanh(z + bias(B_SHIFT)) * bias(B_HALFL) - bias(B_OFFSET)
    codes = jnp.round(bounded) * bias(B_INVHALFW)          # normalized codes
    # project_out augmented with an index column: quant @ lanes 12..43, idx @ 44
    qi = dot(codes, "pout", 128) + bias(B_POUTB)

    # ----- decoder: obs embedding, split first layer (concat equiv.), tail -----
    obs_e = _elu(dot(x, "ow", D_IN_PAD) + bias(B_OB))      # ow zero-padded: no lane slice
    d = _elu(dot(qi, "dw0z", 128) + dot(obs_e, "dw0o", 128) + bias(B_DB0))
    d = _elu(dot(d, "dw1", 128) + bias(B_DB1))
    dec = dot(d, "dw2", 128) + bias(B_DB2)                 # dec @ lanes 0..11, else 0

    out_ref[...] = dec + qi                                # one dense (TB,128) store


# --------------------------- parameters / constants -------------------------
def _linear(key, fan_in, fan_out):
    kw, kb = jax.random.split(key)
    w = jax.random.normal(kw, (fan_in, fan_out), jnp.float32) / np.sqrt(fan_in)
    b = 0.01 * jax.random.normal(kb, (fan_out,), jnp.float32)
    return w, b


def make_params(key):
    keys = jax.random.split(key, 10)
    p = {}
    p["ew0"], p["eb0"] = _linear(keys[0], D_IN, ENC_HIDDEN[0])
    p["ew1"], p["eb1"] = _linear(keys[1], ENC_HIDDEN[0], ENC_HIDDEN[1])
    p["ew2"], p["eb2"] = _linear(keys[2], ENC_HIDDEN[1], Z_LENGTH)
    p["pin_w"], p["pin_b"] = _linear(keys[3], Z_LENGTH, N_LEVELS)
    p["pout_w"], p["pout_b"] = _linear(keys[4], N_LEVELS, Z_LENGTH)
    p["ow"], p["ob"] = _linear(keys[5], ONE_STEP_OBS, BOT_PROP_EMBED)
    # decoder layer 0 acts on concat([quant, obs_embd]); split into z/obs parts.
    p["dw0z"], p["db0"] = _linear(keys[6], Z_LENGTH, DEC_HIDDEN[0])
    p["dw0o"], _ = _linear(keys[7], BOT_PROP_EMBED, DEC_HIDDEN[0])
    p["dw1"], p["db1"] = _linear(keys[8], DEC_HIDDEN[0], DEC_HIDDEN[1])
    p["dw2"], p["db2"] = _linear(keys[9], DEC_HIDDEN[1], NUM_ACTIONS)
    return p


def fsq_np_constants(levels, eps=1e-3):
    lv = np.asarray(levels, np.float32)
    half_l = ((lv - 1.0) * (1.0 - eps) / 2.0).astype(np.float32)
    offset = np.where(lv % 2 == 0, 0.5, 0.0).astype(np.float32)
    shift = np.arctanh(offset / half_l).astype(np.float32)
    halfw = np.floor(lv / 2.0).astype(np.float32)
    basis = np.concatenate(([1.0], np.cumprod(lv[:-1]))).astype(np.float32)
    return dict(half_l=half_l, offset=offset, shift=shift, halfw=halfw, basis=basis)


def pack_params(params, levels=FSQ_LEVELS):
    """Pack all weights/biases/FSQ constants into two lane-dense f32 slabs."""
    c = fsq_np_constants(levels)
    W = np.zeros((W_ROWS, LANES), np.float32)

    def put_w(name, arr, row_off=0, col_off=0):
        a = np.asarray(arr, np.float32)
        r0 = W_OFF[name] + row_off
        W[r0:r0 + a.shape[0], col_off:col_off + a.shape[1]] = a

    put_w("ew0", params["ew0"])                              # (143, 64)
    put_w("ew1", params["ew1"])                              # (64, 32)
    put_w("ew2", params["ew2"])                              # (32, 32)
    put_w("pin", params["pin_w"])                            # (32, 3)
    put_w("pout", params["pout_w"], col_off=Q_LO)            # quant at lanes 12..43
    W[W_OFF["pout"]:W_OFF["pout"] + N_LEVELS, IDX_COL] = c["halfw"] * c["basis"]
    put_w("ow", params["ow"])                                # (45, 32); rows 45.. zero
    put_w("dw0z", params["dw0z"], row_off=Q_LO)              # reads quant lanes of qi
    put_w("dw0o", params["dw0o"])                            # (32, 32)
    put_w("dw1", params["dw1"])                              # (32, 32)
    put_w("dw2", params["dw2"], col_off=DEC_LO)              # dec at lanes 0..11

    Bm = np.zeros((B_ROWS, LANES), np.float32)

    def put_b(row, arr, col_off=0):
        a = np.asarray(arr, np.float32).reshape(-1)
        Bm[row, col_off:col_off + a.shape[0]] = a

    put_b(B_EB0, params["eb0"])
    put_b(B_EB1, params["eb1"])
    put_b(B_EB2, params["eb2"])
    put_b(B_PINB, params["pin_b"])
    put_b(B_POUTB, params["pout_b"], col_off=Q_LO)
    Bm[B_POUTB, IDX_COL] = float(np.sum(c["halfw"] * c["basis"]))   # idx bias term
    put_b(B_OB, params["ob"])
    put_b(B_DB0, params["db0"])
    put_b(B_DB1, params["db1"])
    put_b(B_DB2, params["db2"], col_off=DEC_LO)
    put_b(B_SHIFT, c["shift"])
    put_b(B_HALFL, c["half_l"])
    put_b(B_OFFSET, c["offset"])
    put_b(B_INVHALFW, 1.0 / c["halfw"])
    return jnp.asarray(W), jnp.asarray(Bm)


# --------------------------------- wrapper -----------------------------------
def fsqvae_forward(x, w_slab, b_slab):
    B = x.shape[0]
    # Collapse the grid: one tile of the whole batch (grid of 1).  For v7x with
    # large batches, use TB = B // 2 so the "parallel" axis spans both TCs.
    TB = B
    assert B % TB == 0 and TB % 8 == 0
    grid = (B // TB,)

    x_pad = jnp.zeros((B, D_IN_PAD), jnp.float32).at[:, :D_IN].set(
        x.astype(jnp.float32))

    out = pl.pallas_call(
        fsqvae_forward_kernel,
        grid=grid,
        in_specs=[
            pl.BlockSpec((TB, D_IN_PAD), lambda i: (i, 0)),
            pl.BlockSpec((W_ROWS, LANES), lambda i: (0, 0)),
            pl.BlockSpec((B_ROWS, LANES), lambda i: (0, 0)),
        ],
        out_specs=pl.BlockSpec((TB, LANES), lambda i: (i, 0)),
        out_shape=jax.ShapeDtypeStruct((B, LANES), jnp.float32),
        compiler_params=pltpu.CompilerParams(dimension_semantics=("parallel",)),
    )(x_pad, w_slab, b_slab)

    dec = out[:, DEC_LO:DEC_HI]                              # action mean
    quant = out[:, Q_LO:Q_HI]                                # quant_t
    id_t = jnp.round(out[:, IDX_COL:IDX_COL + 1]).astype(jnp.int32)
    return dec, id_t, quant


# ------------------------------ pure-JAX reference ---------------------------
def reference_forward(x, params, levels=FSQ_LEVELS):
    c = fsq_np_constants(levels)
    elu = lambda v: jnp.where(v > 0, v, jnp.exp(jnp.minimum(v, 0.0)) - 1.0)
    # Same (default) matmul precision as the kernel to keep id_t comparable.
    h = elu(jnp.dot(x, params["ew0"]) + params["eb0"])
    h = elu(jnp.dot(h, params["ew1"]) + params["eb1"])
    z_e = jnp.dot(h, params["ew2"]) + params["eb2"]
    z = jnp.dot(z_e, params["pin_w"]) + params["pin_b"]
    q = jnp.round(jnp.tanh(z + c["shift"]) * c["half_l"] - c["offset"])
    codes = q / c["halfw"]
    idx = jnp.sum((q + c["halfw"]) * c["basis"], axis=-1,
                  keepdims=True).astype(jnp.int32)
    quant = jnp.dot(codes, params["pout_w"]) + params["pout_b"]
    obs_e = elu(jnp.dot(x[:, :ONE_STEP_OBS], params["ow"]) + params["ob"])
    d = elu(jnp.dot(quant, params["dw0z"]) + jnp.dot(obs_e, params["dw0o"])
            + params["db0"])
    d = elu(jnp.dot(d, params["dw1"]) + params["db1"])
    dec = jnp.dot(d, params["dw2"]) + params["db2"]
    return dec, idx, quant


# ----------------------------------- main ------------------------------------
if __name__ == "__main__":
    key = jax.random.PRNGKey(0)
    kx, kp = jax.random.split(key)
    x = jax.random.normal(kx, (BATCH, D_IN), jnp.float32)
    params = make_params(kp)
    w_slab, b_slab = pack_params(params)

    dec, id_t, quant = jax.block_until_ready(fsqvae_forward(x, w_slab, b_slab))

    ref_dec, ref_id, ref_quant = reference_forward(x, params)
    assert dec.shape == (BATCH, NUM_ACTIONS)
    assert id_t.shape == (BATCH, 1) and id_t.dtype == jnp.int32
    assert quant.shape == (BATCH, Z_LENGTH)
    np.testing.assert_allclose(np.asarray(dec), np.asarray(ref_dec),
                               rtol=1e-2, atol=1e-2)
    np.testing.assert_allclose(np.asarray(quant), np.asarray(ref_quant),
                               rtol=1e-2, atol=1e-2)
    assert np.array_equal(np.asarray(id_t), np.asarray(ref_id))

    print("KERNEL_OK")
</pallas_src>

<mosaic_0001>
module attributes {stable_mosaic.version = 11 : i64} {
  func.func @fsqvae_forward_kernel(%arg0: i32, %arg1: memref<16x256xf32, #tpu.memory_space<vmem>>, %arg2: memref<1536x128xf32, #tpu.memory_space<vmem>>, %arg3: memref<16x128xf32, #tpu.memory_space<vmem>>, %arg4: memref<16x128xf32, #tpu.memory_space<vmem>>) attributes {dimension_semantics = [#tpu.dimension_semantics<parallel>], iteration_bounds = array<i64: 1>, scalar_prefetch = 0 : i64, scratch_operands = 0 : i64, tpu.core_type = #tpu.core_type<tc>, window_params = [{transform_indices = @transform_0, window_bounds = array<i64: 16, 256>}, {pipeline_mode = #tpu.pipeline_mode<synchronous>, transform_indices = @transform_1, window_bounds = array<i64: 1536, 128>}, {pipeline_mode = #tpu.pipeline_mode<synchronous>, transform_indices = @transform_2, window_bounds = array<i64: 16, 128>}, {transform_indices = @transform_3, window_bounds = array<i64: 16, 128>}]} {
    %c0 = arith.constant 0 : index
    %c0_0 = arith.constant 0 : index
    %0 = vector.load %arg1[%c0, %c0_0] : memref<16x256xf32, #tpu.memory_space<vmem>>, vector<16x256xf32>
    %c0_1 = arith.constant 0 : index
    %c0_2 = arith.constant 0 : index
    %1 = vector.load %arg2[%c0_1, %c0_2] : memref<1536x128xf32, #tpu.memory_space<vmem>>, vector<256x128xf32>
    %cst = arith.constant dense<0.000000e+00> : vector<16x128xf32>
    %2 = tpu.matmul %0, %1, %cst {dimension_numbers = #tpu.dot_dimension_numbers<[1], [0], [0], [1], [0, 0, 1, 1], [], []>} : vector<16x256xf32>, vector<256x128xf32>, vector<16x128xf32> -> vector<16x128xf32>
    %c0_3 = arith.constant 0 : index
    %c0_4 = arith.constant 0 : index
    %3 = vector.load %arg3[%c0_3, %c0_4] : memref<16x128xf32, #tpu.memory_space<vmem>>, vector<1x128xf32>
    %4 = vector.broadcast %3 : vector<1x128xf32> to vector<16x128xf32>
    %5 = arith.addf %2, %4 : vector<16x128xf32>
    %cst_5 = arith.constant 0.000000e+00 : f32
    %6 = vector.broadcast %cst_5 : f32 to vector<16x128xf32>
    %7 = arith.cmpf ogt, %5, %6 : vector<16x128xf32>
    %cst_6 = arith.constant 0.000000e+00 : f32
    %8 = vector.broadcast %cst_6 : f32 to vector<16x128xf32>
    %9 = arith.minimumf %5, %8 : vector<16x128xf32>
    %10 = math.exp %9 : vector<16x128xf32>
    %cst_7 = arith.constant 1.000000e+00 : f32
    %11 = vector.broadcast %cst_7 : f32 to vector<16x128xf32>
    %12 = arith.subf %10, %11 : vector<16x128xf32>
    %13 = arith.select %7, %5, %12 : vector<16x128xi1>, vector<16x128xf32>
    %c256 = arith.constant 256 : index
    %c0_8 = arith.constant 0 : index
    %14 = vector.load %arg2[%c256, %c0_8] : memref<1536x128xf32, #tpu.memory_space<vmem>>, vector<128x128xf32>
    %cst_9 = arith.constant dense<0.000000e+00> : vector<16x128xf32>
    %15 = tpu.matmul %13, %14, %cst_9 {dimension_numbers = #tpu.dot_dimension_numbers<[1], [0], [0], [1], [0, 0, 1, 1], [], []>} : vector<16x128xf32>, vector<128x128xf32>, vector<16x128xf32> -> vector<16x128xf32>
    %c1 = arith.constant 1 : index
    %c0_10 = arith.constant 0 : index
    %16 = vector.load %arg3[%c1, %c0_10] : memref<16x128xf32, #tpu.memory_space<vmem>>, vector<1x128xf32>
    %17 = vector.broadcast %16 : vector<1x128xf32> to vector<16x128xf32>
    %18 = arith.addf %15, %17 : vector<16x128xf32>
    %cst_11 = arith.constant 0.000000e+00 : f32
    %19 = vector.broadcast %cst_11 : f32 to vector<16x128xf32>
    %20 = arith.cmpf ogt, %18, %19 : vector<16x128xf32>
    %cst_12 = arith.constant 0.000000e+00 : f32
    %21 = vector.broadcast %cst_12 : f32 to vector<16x128xf32>
    %22 = arith.minimumf %18, %21 : vector<16x128xf32>
    %23 = math.exp %22 : vector<16x128xf32>
    %cst_13 = arith.constant 1.000000e+00 : f32
    %24 = vector.broadcast %cst_13 : f32 to vector<16x128xf32>
    %25 = arith.subf %23, %24 : vector<16x128xf32>
    %26 = arith.select %20, %18, %25 : vector<16x128xi1>, vector<16x128xf32>
    %c384 = arith.constant 384 : index
    %c0_14 = arith.constant 0 : index
    %27 = vector.load %arg2[%c384, %c0_14] : memref<1536x128xf32, #tpu.memory_space<vmem>>, vector<128x128xf32>
    %cst_15 = arith.constant dense<0.000000e+00> : vector<16x128xf32>
    %28 = tpu.matmul %26, %27, %cst_15 {dimension_numbers = #tpu.dot_dimension_numbers<[1], [0], [0], [1], [0, 0, 1, 1], [], []>} : vector<16x128xf32>, vector<128x128xf32>, vector<16x128xf32> -> vector<16x128xf32>
    %c2 = arith.constant 2 : index
    %c0_16 = arith.constant 0 : index
    %29 = vector.load %arg3[%c2, %c0_16] : memref<16x128xf32, #tpu.memory_space<vmem>>, vector<1x128xf32>
    %30 = vector.broadcast %29 : vector<1x128xf32> to vector<16x128xf32>
    %31 = arith.addf %28, %30 : vector<16x128xf32>
    %c512 = arith.constant 512 : index
    %c0_17 = arith.constant 0 : index
    %32 = vector.load %arg2[%c512, %c0_17] : memref<1536x128xf32, #tpu.memory_space<vmem>>, vector<128x128xf32>
    %cst_18 = arith.constant dense<0.000000e+00> : vector<16x128xf32>
    %33 = tpu.matmul %31, %32, %cst_18 {dimension_numbers = #tpu.dot_dimension_numbers<[1], [0], [0], [1], [0, 0, 1, 1], [], []>} : vector<16x128xf32>, vector<128x128xf32>, vector<16x128xf32> -> vector<16x128xf32>
    %c3 = arith.constant 3 : index
    %c0_19 = arith.constant 0 : index
    %34 = vector.load %arg3[%c3, %c0_19] : memref<16x128xf32, #tpu.memory_space<vmem>>, vector<1x128xf32>
    %35 = vector.broadcast %34 : vector<1x128xf32> to vector<16x128xf32>
    %36 = arith.addf %33, %35 : vector<16x128xf32>
    %c9 = arith.constant 9 : index
    %c0_20 = arith.constant 0 : index
    %37 = vector.load %arg3[%c9, %c0_20] : memref<16x128xf32, #tpu.memory_space<vmem>>, vector<1x128xf32>
    %38 = vector.broadcast %37 : vector<1x128xf32> to vector<16x128xf32>
    %39 = arith.addf %36, %38 : vector<16x128xf32>
    %40 = math.tanh %39 : vector<16x128xf32>
    %c10 = arith.constant 10 : index
    %c0_21 = arith.constant 0 : index
    %41 = vector.load %arg3[%c10, %c0_21] : memref<16x128xf32, #tpu.memory_space<vmem>>, vector<1x128xf32>
    %42 = vector.broadcast %41 : vector<1x128xf32> to vector<16x128xf32>
    %43 = arith.mulf %40, %42 : vector<16x128xf32>
    %c11 = arith.constant 11 : index
    %c0_22 = arith.constant 0 : index
    %44 = vector.load %arg3[%c11, %c0_22] : memref<16x128xf32, #tpu.memory_space<vmem>>, vector<1x128xf32>
    %45 = vector.broadcast %44 : vector<1x128xf32> to vector<16x128xf32>
    %46 = arith.subf %43, %45 : vector<16x128xf32>
    %47 = math.roundeven %46 : vector<16x128xf32>
    %c12 = arith.constant 12 : index
    %c0_23 = arith.constant 0 : index
    %48 = vector.load %arg3[%c12, %c0_23] : memref<16x128xf32, #tpu.memory_space<vmem>>, vector<1x128xf32>
    %49 = vector.broadcast %48 : vector<1x128xf32> to vector<16x128xf32>
    %50 = arith.mulf %47, %49 : vector<16x128xf32>
    %c640 = arith.constant 640 : index
    %c0_24 = arith.constant 0 : index
    %51 = vector.load %arg2[%c640, %c0_24] : memref<1536x128xf32, #tpu.memory_space<vmem>>, vector<128x128xf32>
    %cst_25 = arith.constant dense<0.000000e+00> : vector<16x128xf32>
    %52 = tpu.matmul %50, %51, %cst_25 {dimension_numbers = #tpu.dot_dimension_numbers<[1], [0], [0], [1], [0, 0, 1, 1], [], []>} : vector<16x128xf32>, vector<128x128xf32>, vector<16x128xf32> -> vector<16x128xf32>
    %c4 = arith.constant 4 : index
    %c0_26 = arith.constant 0 : index
    %53 = vector.load %arg3[%c4, %c0_26] : memref<16x128xf32, #tpu.memory_space<vmem>>, vector<1x128xf32>
    %54 = vector.broadcast %53 : vector<1x128xf32> to vector<16x128xf32>
    %55 = arith.addf %52, %54 : vector<16x128xf32>
    %c768 = arith.constant 768 : index
    %c0_27 = arith.constant 0 : index
    %56 = vector.load %arg2[%c768, %c0_27] : memref<1536x128xf32, #tpu.memory_space<vmem>>, vector<256x128xf32>
    %cst_28 = arith.constant dense<0.000000e+00> : vector<16x128xf32>
    %57 = tpu.matmul %0, %56, %cst_28 {dimension_numbers = #tpu.dot_dimension_numbers<[1], [0], [0], [1], [0, 0, 1, 1], [], []>} : vector<16x256xf32>, vector<256x128xf32>, vector<16x128xf32> -> vector<16x128xf32>
    %c5 = arith.constant 5 : index
    %c0_29 = arith.constant 0 : index
    %58 = vector.load %arg3[%c5, %c0_29] : memref<16x128xf32, #tpu.memory_space<vmem>>, vector<1x128xf32>
    %59 = vector.broadcast %58 : vector<1x128xf32> to vector<16x128xf32>
    %60 = arith.addf %57, %59 : vector<16x128xf32>
    %cst_30 = arith.constant 0.000000e+00 : f32
    %61 = vector.broadcast %cst_30 : f32 to vector<16x128xf32>
    %62 = arith.cmpf ogt, %60, %61 : vector<16x128xf32>
    %cst_31 = arith.constant 0.000000e+00 : f32
    %63 = vector.broadcast %cst_31 : f32 to vector<16x128xf32>
    %64 = arith.minimumf %60, %63 : vector<16x128xf32>
    %65 = math.exp %64 : vector<16x128xf32>
    %cst_32 = arith.constant 1.000000e+00 : f32
    %66 = vector.broadcast %cst_32 : f32 to vector<16x128xf32>
    %67 = arith.subf %65, %66 : vector<16x128xf32>
    %68 = arith.select %62, %60, %67 : vector<16x128xi1>, vector<16x128xf32>
    %c1024 = arith.constant 1024 : index
    %c0_33 = arith.constant 0 : index
    %69 = vector.load %arg2[%c1024, %c0_33] : memref<1536x128xf32, #tpu.memory_space<vmem>>, vector<128x128xf32>
    %cst_34 = arith.constant dense<0.000000e+00> : vector<16x128xf32>
    %70 = tpu.matmul %55, %69, %cst_34 {dimension_numbers = #tpu.dot_dimension_numbers<[1], [0], [0], [1], [0, 0, 1, 1], [], []>} : vector<16x128xf32>, vector<128x128xf32>, vector<16x128xf32> -> vector<16x128xf32>
    %c1152 = arith.constant 1152 : index
    %c0_35 = arith.constant 0 : index
    %71 = vector.load %arg2[%c1152, %c0_35] : memref<1536x128xf32, #tpu.memory_space<vmem>>, vector<128x128xf32>
    %cst_36 = arith.constant dense<0.000000e+00> : vector<16x128xf32>
    %72 = tpu.matmul %68, %71, %cst_36 {dimension_numbers = #tpu.dot_dimension_numbers<[1], [0], [0], [1], [0, 0, 1, 1], [], []>} : vector<16x128xf32>, vector<128x128xf32>, vector<16x128xf32> -> vector<16x128xf32>
    %73 = arith.addf %70, %72 : vector<16x128xf32>
    %c6 = arith.constant 6 : index
    %c0_37 = arith.constant 0 : index
    %74 = vector.load %arg3[%c6, %c0_37] : memref<16x128xf32, #tpu.memory_space<vmem>>, vector<1x128xf32>
    %75 = vector.broadcast %74 : vector<1x128xf32> to vector<16x128xf32>
    %76 = arith.addf %73, %75 : vector<16x128xf32>
    %cst_38 = arith.constant 0.000000e+00 : f32
    %77 = vector.broadcast %cst_38 : f32 to vector<16x128xf32>
    %78 = arith.cmpf ogt, %76, %77 : vector<16x128xf32>
    %cst_39 = arith.constant 0.000000e+00 : f32
    %79 = vector.broadcast %cst_39 : f32 to vector<16x128xf32>
    %80 = arith.minimumf %76, %79 : vector<16x128xf32>
    %81 = math.exp %80 : vector<16x128xf32>
    %cst_40 = arith.constant 1.000000e+00 : f32
    %82 = vector.broadcast %cst_40 : f32 to vector<16x128xf32>
    %83 = arith.subf %81, %82 : vector<16x128xf32>
    %84 = arith.select %78, %76, %83 : vector<16x128xi1>, vector<16x128xf32>
    %c1280 = arith.constant 1280 : index
    %c0_41 = arith.constant 0 : index
    %85 = vector.load %arg2[%c1280, %c0_41] : memref<1536x128xf32, #tpu.memory_space<vmem>>, vector<128x128xf32>
    %cst_42 = arith.constant dense<0.000000e+00> : vector<16x128xf32>
    %86 = tpu.matmul %84, %85, %cst_42 {dimension_numbers = #tpu.dot_dimension_numbers<[1], [0], [0], [1], [0, 0, 1, 1], [], []>} : vector<16x128xf32>, vector<128x128xf32>, vector<16x128xf32> -> vector<16x128xf32>
    %c7 = arith.constant 7 : index
    %c0_43 = arith.constant 0 : index
    %87 = vector.load %arg3[%c7, %c0_43] : memref<16x128xf32, #tpu.memory_space<vmem>>, vector<1x128xf32>
    %88 = vector.broadcast %87 : vector<1x128xf32> to vector<16x128xf32>
    %89 = arith.addf %86, %88 : vector<16x128xf32>
    %cst_44 = arith.constant 0.000000e+00 : f32
    %90 = vector.broadcast %cst_44 : f32 to vector<16x128xf32>
    %91 = arith.cmpf ogt, %89, %90 : vector<16x128xf32>
    %cst_45 = arith.constant 0.000000e+00 : f32
    %92 = vector.broadcast %cst_45 : f32 to vector<16x128xf32>
    %93 = arith.minimumf %89, %92 : vector<16x128xf32>
    %94 = math.exp %93 : vector<16x128xf32>
    %cst_46 = arith.constant 1.000000e+00 : f32
    %95 = vector.broadcast %cst_46 : f32 to vector<16x128xf32>
    %96 = arith.subf %94, %95 : vector<16x128xf32>
    %97 = arith.select %91, %89, %96 : vector<16x128xi1>, vector<16x128xf32>
    %c1408 = arith.constant 1408 : index
    %c0_47 = arith.constant 0 : index
    %98 = vector.load %arg2[%c1408, %c0_47] : memref<1536x128xf32, #tpu.memory_space<vmem>>, vector<128x128xf32>
    %cst_48 = arith.constant dense<0.000000e+00> : vector<16x128xf32>
    %99 = tpu.matmul %97, %98, %cst_48 {dimension_numbers = #tpu.dot_dimension_numbers<[1], [0], [0], [1], [0, 0, 1, 1], [], []>} : vector<16x128xf32>, vector<128x128xf32>, vector<16x128xf32> -> vector<16x128xf32>
    %c8 = arith.constant 8 : index
    %c0_49 = arith.constant 0 : index
    %100 = vector.load %arg3[%c8, %c0_49] : memref<16x128xf32, #tpu.memory_space<vmem>>, vector<1x128xf32>
    %101 = vector.broadcast %100 : vector<1x128xf32> to vector<16x128xf32>
    %102 = arith.addf %99, %101 : vector<16x128xf32>
    %103 = arith.addf %102, %55 : vector<16x128xf32>
    %c0_50 = arith.constant 0 : index
    %c0_51 = arith.constant 0 : index
    %104 = vector.load %arg4[%c0_50, %c0_51] : memref<16x128xf32, #tpu.memory_space<vmem>>, vector<16x128xf32>
    tpu.vector_store %arg4[%c0_50, %c0_51], %103 {strides = array<i32>} : memref<16x128xf32, #tpu.memory_space<vmem>>, vector<16x128xf32>,
    return
  }
  func.func @transform_0(%arg0: i32) -> (i32, i32) {
    %c0_i32 = arith.constant 0 : i32
    %c0_i32_0 = arith.constant 0 : i32
    return %arg0, %c0_i32 : i32, i32
  }
  func.func @transform_1(%arg0: i32) -> (i32, i32) {
    %c0_i32 = arith.constant 0 : i32
    %c0_i32_0 = arith.constant 0 : i32
    %c0_i32_1 = arith.constant 0 : i32
    return %c0_i32, %c0_i32_0 : i32, i32
  }
  func.func @transform_2(%arg0: i32) -> (i32, i32) {
    %c0_i32 = arith.constant 0 : i32
    %c0_i32_0 = arith.constant 0 : i32
    %c0_i32_1 = arith.constant 0 : i32
    return %c0_i32, %c0_i32_0 : i32, i32
  }
  func.func @transform_3(%arg0: i32) -> (i32, i32) {
    %c0_i32 = arith.constant 0 : i32
    %c0_i32_0 = arith.constant 0 : i32
    return %arg0, %c0_i32 : i32, i32
  }
}

</mosaic_0001>

<llo_original>
// kernel: tpu_custom_call.1
$region0: #{tpu_custom_call.1}
  #allocation0 [shape = 'u32[]', space=smem, size = 0x4, offset = 0x4, fixed_abs, tag = 'smem constant byte address 0x4 - core index']
  #allocation1 [shape = 'u32[144,128]{1,0:T(1,128)}', space=vmem, size = 0x12000, scoped, tag = 'internal scratch']
  %s0 = inlined_call_operand.hbm [shape: f32[16,256], index: 0, kind: input, shape index: {}]
  %s1 = inlined_call_operand.hbm [shape: f32[1536,128], index: 1, kind: input, shape index: {}]
  %s2 = inlined_call_operand.hbm [shape: f32[16,128], index: 2, kind: input, shape index: {}]
  %s3 = inlined_call_operand.hbm [shape: f32[16,128], index: 3, kind: output, shape index: {}]
  %s4 = sld [smem:[#allocation0]]
  $region34: #{tpu_custom_call.1} parent=0
    _
  %s6 = ssub.s32 1, %s4
  %s7 = scalar_select 0, %s6, %s4
  $region1: #{tpu_custom_call.1} parent=0
    #allocation2 [shape = 'u8[16384]{0}', space=vmem, size = 0x4000, scoped, tag = 'input window, operand 0, single buffered']
    #allocation3 [shape = 's32[1]{0}', space=sflag, size = 0x4, scoped, tag = 'scoped memory for tpu_custom_call.1']
    #allocation4 [shape = 's32[1]{0}', space=sflag, size = 0x4, scoped, tag = 'scoped memory for tpu_custom_call.1']
    #allocation5 [shape = 'u8[786432]{0}', space=vmem, size = 0xc0000, scoped, tag = 'input window, operand 1, single buffered']
    #allocation6 [shape = 's32[1]{0}', space=sflag, size = 0x4, scoped, tag = 'scoped memory for tpu_custom_call.1']
    #allocation7 [shape = 'u8[8192]{0}', space=vmem, size = 0x2000, scoped, tag = 'input window, operand 2, single buffered']
    #allocation8 [shape = 'u8[8192]{0}', space=vmem, size = 0x2000, scoped, tag = 'output window, operand 0, single buffered']
    %8 = vsyncpa [#allocation3], 0
    %9 = vsyncpa [#allocation6], 0
    %10 = vsyncpa [#allocation4], 0
    // Predicated region
    $region2: #{tpu_custom_call.1} parent=1 // pred_check
      _
    $region3: #{tpu_custom_call.1} parent=1 // pred_check_branch
      %12 = sbr.rel (0) target = $region5
    $region4: #{tpu_custom_call.1} parent=1 // pred_region
      %s14 = ssub.s32 512, 512
      %15 = vsyncadd [#allocation3], %s14
      %s16 = sshll.u32 [#allocation2], 4
      %s17 = int_to_ptr.vmem [resolvable:$true] %s16
      %22 = dma.hbm_to_vmem [thread:$0]  %s0, 512, %s17, [#allocation3], 256, 256, 16
    $region5: #{tpu_custom_call.1} parent=1 // pred_fallthru
      _
    // Predicated region
    $region6: #{tpu_custom_call.1} parent=1 // pred_check
      _
    $region7: #{tpu_custom_call.1} parent=1 // pred_check_branch
      %24 = sbr.rel (0) target = $region9
    $region8: #{tpu_custom_call.1} parent=1 // pred_region
      %s26 = ssub.s32 24576, 24576
      %27 = vsyncadd [#allocation6], %s26
      %s28 = sshll.u32 [#allocation5], 4
      %s29 = int_to_ptr.vmem [resolvable:$true] %s28
      %34 = dma.hbm_to_vmem [thread:$0]  %s1, 24576, %s29, [#allocation6], 128, 128, 8
    $region9: #{tpu_custom_call.1} parent=1 // pred_fallthru
      _
    // Predicated region
    $region10: #{tpu_custom_call.1} parent=1 // pred_check
      _
    $region11: #{tpu_custom_call.1} parent=1 // pred_check_branch
      %36 = sbr.rel (0) target = $region13
    $region12: #{tpu_custom_call.1} parent=1 // pred_region
      %s38 = ssub.s32 256, 256
      %39 = vsyncadd [#allocation6], %s38
      %s40 = sshll.u32 [#allocation7], 4
      %s41 = int_to_ptr.vmem [resolvable:$true] %s40
      %46 = dma.hbm_to_vmem [thread:$0]  %s2, 256, %s41, [#allocation6], 128, 128, 8
    $region13: #{tpu_custom_call.1} parent=1 // pred_fallthru
      _
    // Predicated region
    $region14: #{tpu_custom_call.1} parent=1 // pred_check
      _
    $region15: #{tpu_custom_call.1} parent=1 // pred_check_branch
      %48 = sbr.rel (0) target = $region17
    $region16: #{tpu_custom_call.1} parent=1 // pred_region
      %49 = dma.done [#allocation3], 512
    $region17: #{tpu_custom_call.1} parent=1 // pred_fallthru
      _
    // Predicated region
    $region18: #{tpu_custom_call.1} parent=1 // pred_check
      _
    $region19: #{tpu_custom_call.1} parent=1 // pred_check_branch
      %51 = sbr.rel (0) target = $region21
    $region20: #{tpu_custom_call.1} parent=1 // pred_region
      %52 = dma.done [#allocation6], 24576
    $region21: #{tpu_custom_call.1} parent=1 // pred_fallthru
      _
    // Predicated region
    $region22: #{tpu_custom_call.1} parent=1 // pred_check
      _
    $region23: #{tpu_custom_call.1} parent=1 // pred_check_branch
      %54 = sbr.rel (0) target = $region25
    $region24: #{tpu_custom_call.1} parent=1 // pred_region
      %55 = dma.done [#allocation6], 256
    $region25: #{tpu_custom_call.1} parent=1 // pred_fallthru
      _
    %v56 = vld [vmem:[#allocation2] sm:$0xff]
    %v57 = vld [vmem:[#allocation2 + $0x8] sm:$0xff]
    %v58 = vld [vmem:[#allocation2 + $0x10] sm:$0xff]
    %v59 = vld [vmem:[#allocation2 + $0x18] sm:$0xff]
    %v60 = vld [vmem:[#allocation5] sm:$0xff]
    %v61 = vld [vmem:[#allocation5 + $0x8] sm:$0xff]
    %v62 = vld [vmem:[#allocation5 + $0x10] sm:$0xff]
    %v63 = vld [vmem:[#allocation5 + $0x18] sm:$0xff]
    %v64 = vld [vmem:[#allocation5 + $0x20] sm:$0xff]
    %v65 = vld [vmem:[#allocation5 + $0x28] sm:$0xff]
    %v66 = vld [vmem:[#allocation5 + $0x30] sm:$0xff]
    %v67 = vld [vmem:[#allocation5 + $0x38] sm:$0xff]
    %v68 = vld [vmem:[#allocation5 + $0x40] sm:$0xff]
    %v69 = vld [vmem:[#allocation5 + $0x48] sm:$0xff]
    %v70 = vld [vmem:[#allocation5 + $0x50] sm:$0xff]
    %v71 = vld [vmem:[#allocation5 + $0x58] sm:$0xff]
    %v72 = vld [vmem:[#allocation5 + $0x60] sm:$0xff]
    %v73 = vld [vmem:[#allocation5 + $0x68] sm:$0xff]
    %v74 = vld [vmem:[#allocation5 + $0x70] sm:$0xff]
    %v75 = vld [vmem:[#allocation5 + $0x78] sm:$0xff]
    %v76 = vld [vmem:[#allocation5 + $0x80] sm:$0xff]
    %v77 = vld [vmem:[#allocation5 + $0x88] sm:$0xff]
    %v78 = vld [vmem:[#allocation5 + $0x90] sm:$0xff]
    %v79 = vld [vmem:[#allocation5 + $0x98] sm:$0xff]
    %v80 = vld [vmem:[#allocation5 + $0xa0] sm:$0xff]
    %v81 = vld [vmem:[#allocation5 + $0xa8] sm:$0xff]
    %v82 = vld [vmem:[#allocation5 + $0xb0] sm:$0xff]
    %v83 = vld [vmem:[#allocation5 + $0xb8] sm:$0xff]
    %v84 = vld [vmem:[#allocation5 + $0xc0] sm:$0xff]
    %v85 = vld [vmem:[#allocation5 + $0xc8] sm:$0xff]
    %v86 = vld [vmem:[#allocation5 + $0xd0] sm:$0xff]
    %v87 = vld [vmem:[#allocation5 + $0xd8] sm:$0xff]
    %v88 = vld [vmem:[#allocation5 + $0xe0] sm:$0xff]
    %v89 = vld [vmem:[#allocation5 + $0xe8] sm:$0xff]
    %v90 = vld [vmem:[#allocation5 + $0xf0] sm:$0xff]
    %v91 = vld [vmem:[#allocation5 + $0xf8] sm:$0xff]
    %v92 = vld [vmem:[#allocation7] sm:$0x1]
    %v93 = vlaneseq
    %v94 = vshrl.u32 %v93, 7
    %v95 = vsub.s32 0, %v94
    %v96 = vrot.slane %v92, %v95
    %97 = vmatprep.subr.mxu0 0.0
    %98 = vmatpush1.msra.mxu0 %v60
    %99 = vmatprep.subr.mxu0 0.0
    %100 = vmatpush1.msra.mxu0 %v61
    %101 = vmatprep.subr.mxu0 0.0
    %102 = vmatpush1.msra.mxu0 %v62
    %103 = vmatprep.subr.mxu0 0.0
    %104 = vmatpush1.msra.mxu0 %v63
    %105 = vmatprep.subr.mxu0 0.0
    %106 = vmatpush1.msra.mxu0 %v64
    %107 = vmatprep.subr.mxu0 0.0
    %108 = vmatpush1.msra.mxu0 %v65
    %109 = vmatprep.subr.mxu0 0.0
    %110 = vmatpush1.msra.mxu0 %v66
    %111 = vmatprep.subr.mxu0 0.0
    %112 = vmatpush1.msra.mxu0 %v67
    %113 = vmatprep.subr.mxu0 0.0
    %114 = vmatpush1.msra.mxu0 %v68
    %115 = vmatprep.subr.mxu0 0.0
    %116 = vmatpush1.msra.mxu0 %v69
    %117 = vmatprep.subr.mxu0 0.0
    %118 = vmatpush1.msra.mxu0 %v70
    %119 = vmatprep.subr.mxu0 0.0
    %120 = vmatpush1.msra.mxu0 %v71
    %121 = vmatprep.subr.mxu0 0.0
    %122 = vmatpush1.msra.mxu0 %v72
    %123 = vmatprep.subr.mxu0 0.0
    %124 = vmatpush1.msra.mxu0 %v73
    %125 = vmatprep.subr.mxu0 0.0
    %126 = vmatpush1.msra.mxu0 %v74
    %127 = vmatprep.subr.mxu0 0.0
    %128 = vmatpush1.msra.mxu0 %v75
    %129 = vmatprep.subr.mxu0 0.0
    %130 = vmatpush1.msra.mxu0 %v76
    %131 = vmatprep.subr.mxu0 0.0
    %132 = vmatpush1.msra.mxu0 %v77
    %133 = vmatprep.subr.mxu0 0.0
    %134 = vmatpush1.msra.mxu0 %v78
    %135 = vmatprep.subr.mxu0 0.0
    %136 = vmatpush1.msra.mxu0 %v79
    %137 = vmatprep.subr.mxu0 0.0
    %138 = vmatpush1.msra.mxu0 %v80
    %139 = vmatprep.subr.mxu0 0.0
    %140 = vmatpush1.msra.mxu0 %v81
    %141 = vmatprep.subr.mxu0 0.0
    %142 = vmatpush1.msra.mxu0 %v82
    %143 = vmatprep.subr.mxu0 0.0
    %144 = vmatpush1.msra.mxu0 %v83
    %145 = vmatprep.subr.mxu0 0.0
    %146 = vmatpush1.msra.mxu0 %v84
    %147 = vmatprep.subr.mxu0 0.0
    %148 = vmatpush1.msra.mxu0 %v85
    %149 = vmatprep.subr.mxu0 0.0
    %150 = vmatpush1.msra.mxu0 %v86
    %151 = vmatprep.subr.mxu0 0.0
    %152 = vmatpush1.msra.mxu0 %v87
    %153 = vmatprep.subr.mxu0 0.0
    %154 = vmatpush1.msra.mxu0 %v88
    %155 = vmatprep.subr.mxu0 0.0
    %156 = vmatpush1.msra.mxu0 %v89
    %157 = vmatprep.subr.mxu0 0.0
    %158 = vmatpush1.msra.mxu0 %v90
    %159 = vmatprep.subr.mxu0 0.0
    %160 = vmatpush1.msra.mxu0 %v91
    %161 = vmatprep.mubr.f32.mxu0 %v57
    %162 = vmatmul.mubr.f32.gmra.mrb[0].mxu0 %v56
    %v163 = vpop.f32.mrb[0].mxu0
    %v164 = vadd.f32 %v96, %v163
    %v165 = vpop.f32.mrb[0].mxu0
    %166 = vmatprep.mubr.f32.mxu0 %v59
    %167 = vmatmul.mubr.f32.gmra.mrb[0].mxu0 %v58
    %v168 = vpop.f32.mrb[0].mxu0
    %v169 = vadd.f32 %v96, %v168
    %v170 = vpop.f32.mrb[0].mxu0
    %171 = vdwg.mxu0
    %vm172 = vcmp.gt.f32.partialorder %v164, 0.0
    %vm173 = vcmp.gt.f32.partialorder %v169, 0.0
    %v174 = vmin.f32 %v164, 0.0
    %v175 = vmin.f32 %v169, 0.0
    %v176 = vmul.f32 %v174, 1.442695
    %v177 = vpow.pop %v176
    %v178 = vmul.f32 %v175, 1.442695
    %v179 = vpow.pop %v178
    %v180 = vsub.f32 %v177, 1.0
    %v181 = vsub.f32 %v179, 1.0
    %v182 = vsel %vm172, %v164, %v180
    %v183 = vsel %vm173, %v169, %v181
    %v184 = vld [vmem:[#allocation5 + $0x100] sm:$0xff]
    %v185 = vld [vmem:[#allocation5 + $0x108] sm:$0xff]
    %v186 = vld [vmem:[#allocation5 + $0x110] sm:$0xff]
    %v187 = vld [vmem:[#allocation5 + $0x118] sm:$0xff]
    %v188 = vld [vmem:[#allocation5 + $0x120] sm:$0xff]
    %v189 = vld [vmem:[#allocation5 + $0x128] sm:$0xff]
    %v190 = vld [vmem:[#allocation5 + $0x130] sm:$0xff]
    %v191 = vld [vmem:[#allocation5 + $0x138] sm:$0xff]
    %v192 = vld [vmem:[#allocation5 + $0x140] sm:$0xff]
    %v193 = vld [vmem:[#allocation5 + $0x148] sm:$0xff]
    %v194 = vld [vmem:[#allocation5 + $0x150] sm:$0xff]
    %v195 = vld [vmem:[#allocation5 + $0x158] sm:$0xff]
    %v196 = vld [vmem:[#allocation5 + $0x160] sm:$0xff]
    %v197 = vld [vmem:[#allocation5 + $0x168] sm:$0xff]
    %v198 = vld [vmem:[#allocation5 + $0x170] sm:$0xff]
    %v199 = vld [vmem:[#allocation5 + $0x178] sm:$0xff]
    %v200 = vld [vmem:[#allocation7 + $0x1] sm:$0x1]
    %v201 = vlaneseq
    %v202 = vshrl.u32 %v201, 7
    %v203 = vsub.s32 0, %v202
    %v204 = vrot.slane %v200, %v203
    %205 = vmatprep.subr.mxu0 0.0
    %206 = vmatpush1.msra.mxu0 %v184
    %207 = vmatprep.subr.mxu0 0.0
    %208 = vmatpush1.msra.mxu0 %v185
    %209 = vmatprep.subr.mxu0 0.0
    %210 = vmatpush1.msra.mxu0 %v186
    %211 = vmatprep.subr.mxu0 0.0
    %212 = vmatpush1.msra.mxu0 %v187
    %213 = vmatprep.subr.mxu0 0.0
    %214 = vmatpush1.msra.mxu0 %v188
    %215 = vmatprep.subr.mxu0 0.0
    %216 = vmatpush1.msra.mxu0 %v189
    %217 = vmatprep.subr.mxu0 0.0
    %218 = vmatpush1.msra.mxu0 %v190
    %219 = vmatprep.subr.mxu0 0.0
    %220 = vmatpush1.msra.mxu0 %v191
    %221 = vmatprep.subr.mxu0 0.0
    %222 = vmatpush1.msra.mxu0 %v192
    %223 = vmatprep.subr.mxu0 0.0
    %224 = vmatpush1.msra.mxu0 %v193
    %225 = vmatprep.subr.mxu0 0.0
    %226 = vmatpush1.msra.mxu0 %v194
    %227 = vmatprep.subr.mxu0 0.0
    %228 = vmatpush1.msra.mxu0 %v195
    %229 = vmatprep.subr.mxu0 0.0
    %230 = vmatpush1.msra.mxu0 %v196
    %231 = vmatprep.subr.mxu0 0.0
    %232 = vmatpush1.msra.mxu0 %v197
    %233 = vmatprep.subr.mxu0 0.0
    %234 = vmatpush1.msra.mxu0 %v198
    %235 = vmatprep.subr.mxu0 0.0
    %236 = vmatpush1.msra.mxu0 %v199
    %237 = vmatprep.subr.mxu0 0.0
    %238 = vmatpush1.msra.mxu0 0.0
    %239 = vmatprep.subr.mxu0 0.0
    %240 = vmatpush1.msra.mxu0 0.0
    %241 = vmatprep.subr.mxu0 0.0
    %242 = vmatpush1.msra.mxu0 0.0
    %243 = vmatprep.subr.mxu0 0.0
    %244 = vmatpush1.msra.mxu0 0.0
    %245 = vmatprep.subr.mxu0 0.0
    %246 = vmatpush1.msra.mxu0 0.0
    %247 = vmatprep.subr.mxu0 0.0
    %248 = vmatpush1.msra.mxu0 0.0
    %249 = vmatprep.subr.mxu0 0.0
    %250 = vmatpush1.msra.mxu0 0.0
    %251 = vmatprep.subr.mxu0 0.0
    %252 = vmatpush1.msra.mxu0 0.0
    %253 = vmatprep.subr.mxu0 0.0
    %254 = vmatpush1.msra.mxu0 0.0
    %255 = vmatprep.subr.mxu0 0.0
    %256 = vmatpush1.msra.mxu0 0.0
    %257 = vmatprep.subr.mxu0 0.0
    %258 = vmatpush1.msra.mxu0 0.0
    %259 = vmatprep.subr.mxu0 0.0
    %260 = vmatpush1.msra.mxu0 0.0
    %261 = vmatprep.subr.mxu0 0.0
    %262 = vmatpush1.msra.mxu0 0.0
    %263 = vmatprep.subr.mxu0 0.0
    %264 = vmatpush1.msra.mxu0 0.0
    %265 = vmatprep.subr.mxu0 0.0
    %266 = vmatpush1.msra.mxu0 0.0
    %267 = vmatprep.subr.mxu0 0.0
    %268 = vmatpush1.msra.mxu0 0.0
    %269 = vmatprep.mubr.f32.mxu0 0.0
    %270 = vmatmul.mubr.f32.gmra.mrb[0].mxu0 %v182
    %v271 = vpop.f32.mrb[0].mxu0
    %v272 = vadd.f32 %v204, %v271
    %v273 = vpop.f32.mrb[0].mxu0
    %274 = vmatprep.mubr.f32.mxu0 0.0
    %275 = vmatmul.mubr.f32.gmra.mrb[0].mxu0 %v183
    %v276 = vpop.f32.mrb[0].mxu0
    %v277 = vadd.f32 %v204, %v276
    %v278 = vpop.f32.mrb[0].mxu0
    %279 = vdwg.mxu0
    %vm280 = vcmp.gt.f32.partialorder %v272, 0.0
    %vm281 = vcmp.gt.f32.partialorder %v277, 0.0
    %v282 = vmin.f32 %v272, 0.0
    %v283 = vmin.f32 %v277, 0.0
    %v284 = vmul.f32 %v282, 1.442695
    %v285 = vpow.pop %v284
    %v286 = vmul.f32 %v283, 1.442695
    %v287 = vpow.pop %v286
    %v288 = vsub.f32 %v285, 1.0
    %v289 = vsub.f32 %v287, 1.0
    %v290 = vsel %vm280, %v272, %v288
    %v291 = vsel %vm281, %v277, %v289
    %v292 = vld [vmem:[#allocation5 + $0x180] sm:$0xff]
    %v293 = vld [vmem:[#allocation5 + $0x188] sm:$0xff]
    %v294 = vld [vmem:[#allocation5 + $0x190] sm:$0xff]
    %v295 = vld [vmem:[#allocation5 + $0x198] sm:$0xff]
    %v296 = vld [vmem:[#allocation5 + $0x1a0] sm:$0xff]
    %v297 = vld [vmem:[#allocation5 + $0x1a8] sm:$0xff]
    %v298 = vld [vmem:[#allocation5 + $0x1b0] sm:$0xff]
    %v299 = vld [vmem:[#allocation5 + $0x1b8] sm:$0xff]
    %v300 = vld [vmem:[#allocation5 + $0x1c0] sm:$0xff]
    %v301 = vld [vmem:[#allocation5 + $0x1c8] sm:$0xff]
    %v302 = vld [vmem:[#allocation5 + $0x1d0] sm:$0xff]
    %v303 = vld [vmem:[#allocation5 + $0x1d8] sm:$0xff]
    %v304 = vld [vmem:[#allocation5 + $0x1e0] sm:$0xff]
    %v305 = vld [vmem:[#allocation5 + $0x1e8] sm:$0xff]
    %v306 = vld [vmem:[#allocation5 + $0x1f0] sm:$0xff]
    %v307 = vld [vmem:[#allocation5 + $0x1f8] sm:$0xff]
    %v308 = vld [vmem:[#allocation7 + $0x2] sm:$0x1]
    %v309 = vlaneseq
    %v310 = vshrl.u32 %v309, 7
    %v311 = vsub.s32 0, %v310
    %v312 = vrot.slane %v308, %v311
    %313 = vmatprep.subr.mxu0 0.0
    %314 = vmatpush1.msra.mxu0 %v292
    %315 = vmatprep.subr.mxu0 0.0
    %316 = vmatpush1.msra.mxu0 %v293
    %317 = vmatprep.subr.mxu0 0.0
    %318 = vmatpush1.msra.mxu0 %v294
    %319 = vmatprep.subr.mxu0 0.0
    %320 = vmatpush1.msra.mxu0 %v295
    %321 = vmatprep.subr.mxu0 0.0
    %322 = vmatpush1.msra.mxu0 %v296
    %323 = vmatprep.subr.mxu0 0.0
    %324 = vmatpush1.msra.mxu0 %v297
    %325 = vmatprep.subr.mxu0 0.0
    %326 = vmatpush1.msra.mxu0 %v298
    %327 = vmatprep.subr.mxu0 0.0
    %328 = vmatpush1.msra.mxu0 %v299
    %329 = vmatprep.subr.mxu0 0.0
    %330 = vmatpush1.msra.mxu0 %v300
    %331 = vmatprep.subr.mxu0 0.0
    %332 = vmatpush1.msra.mxu0 %v301
    %333 = vmatprep.subr.mxu0 0.0
    %334 = vmatpush1.msra.mxu0 %v302
    %335 = vmatprep.subr.mxu0 0.0
    %336 = vmatpush1.msra.mxu0 %v303
    %337 = vmatprep.subr.mxu0 0.0
    %338 = vmatpush1.msra.mxu0 %v304
    %339 = vmatprep.subr.mxu0 0.0
    %340 = vmatpush1.msra.mxu0 %v305
    %341 = vmatprep.subr.mxu0 0.0
    %342 = vmatpush1.msra.mxu0 %v306
    %343 = vmatprep.subr.mxu0 0.0
    %344 = vmatpush1.msra.mxu0 %v307
    %345 = vmatprep.subr.mxu0 0.0
    %346 = vmatpush1.msra.mxu0 0.0
    %347 = vmatprep.subr.mxu0 0.0
    %348 = vmatpush1.msra.mxu0 0.0
    %349 = vmatprep.subr.mxu0 0.0
    %350 = vmatpush1.msra.mxu0 0.0
    %351 = vmatprep.subr.mxu0 0.0
    %352 = vmatpush1.msra.mxu0 0.0
    %353 = vmatprep.subr.mxu0 0.0
    %354 = vmatpush1.msra.mxu0 0.0
    %355 = vmatprep.subr.mxu0 0.0
    %356 = vmatpush1.msra.mxu0 0.0
    %357 = vmatprep.subr.mxu0 0.0
    %358 = vmatpush1.msra.mxu0 0.0
    %359 = vmatprep.subr.mxu0 0.0
    %360 = vmatpush1.msra.mxu0 0.0
    %361 = vmatprep.subr.mxu0 0.0
    %362 = vmatpush1.msra.mxu0 0.0
    %363 = vmatprep.subr.mxu0 0.0
    %364 = vmatpush1.msra.mxu0 0.0
    %365 = vmatprep.subr.mxu0 0.0
    %366 = vmatpush1.msra.mxu0 0.0
    %367 = vmatprep.subr.mxu0 0.0
    %368 = vmatpush1.msra.mxu0 0.0
    %369 = vmatprep.subr.mxu0 0.0
    %370 = vmatpush1.msra.mxu0 0.0
    %371 = vmatprep.subr.mxu0 0.0
    %372 = vmatpush1.msra.mxu0 0.0
    %373 = vmatprep.subr.mxu0 0.0
    %374 = vmatpush1.msra.mxu0 0.0
    %375 = vmatprep.subr.mxu0 0.0
    %376 = vmatpush1.msra.mxu0 0.0
    %377 = vmatprep.mubr.f32.mxu0 0.0
    %378 = vmatmul.mubr.f32.gmra.mrb[0].mxu0 %v290
    %v379 = vpop.f32.mrb[0].mxu0
    %v380 = vadd.f32 %v312, %v379
    %v381 = vpop.f32.mrb[0].mxu0
    %382 = vmatprep.mubr.f32.mxu0 0.0
    %383 = vmatmul.mubr.f32.gmra.mrb[0].mxu0 %v291
    %v384 = vpop.f32.mrb[0].mxu0
    %v385 = vadd.f32 %v312, %v384
    %v386 = vpop.f32.mrb[0].mxu0
    %387 = vdwg.mxu0
    %v388 = vld [vmem:[#allocation5 + $0x200] sm:$0xff]
    %v389 = vld [vmem:[#allocation5 + $0x208] sm:$0xff]
    %v390 = vld [vmem:[#allocation5 + $0x210] sm:$0xff]
    %v391 = vld [vmem:[#allocation5 + $0x218] sm:$0xff]
    %v392 = vld [vmem:[#allocation5 + $0x220] sm:$0xff]
    %v393 = vld [vmem:[#allocation5 + $0x228] sm:$0xff]
    %v394 = vld [vmem:[#allocation5 + $0x230] sm:$0xff]
    %v395 = vld [vmem:[#allocation5 + $0x238] sm:$0xff]
    %v396 = vld [vmem:[#allocation5 + $0x240] sm:$0xff]
    %v397 = vld [vmem:[#allocation5 + $0x248] sm:$0xff]
    %v398 = vld [vmem:[#allocation5 + $0x250] sm:$0xff]
    %v399 = vld [vmem:[#allocation5 + $0x258] sm:$0xff]
    %v400 = vld [vmem:[#allocation5 + $0x260] sm:$0xff]
    %v401 = vld [vmem:[#allocation5 + $0x268] sm:$0xff]
    %v402 = vld [vmem:[#allocation5 + $0x270] sm:$0xff]
    %v403 = vld [vmem:[#allocation5 + $0x278] sm:$0xff]
    %v404 = vld [vmem:[#allocation7 + $0x3] sm:$0x1]
    %v405 = vlaneseq
    %v406 = vshrl.u32 %v405, 7
    %v407 = vsub.s32 0, %v406
    %v408 = vrot.slane %v404, %v407
    %409 = vmatprep.subr.mxu0 0.0
    %410 = vmatpush1.msra.mxu0 %v388
    %411 = vmatprep.subr.mxu0 0.0
    %412 = vmatpush1.msra.mxu0 %v389
    %413 = vmatprep.subr.mxu0 0.0
    %414 = vmatpush1.msra.mxu0 %v390
    %415 = vmatprep.subr.mxu0 0.0
    %416 = vmatpush1.msra.mxu0 %v391
    %417 = vmatprep.subr.mxu0 0.0
    %418 = vmatpush1.msra.mxu0 %v392
    %419 = vmatprep.subr.mxu0 0.0
    %420 = vmatpush1.msra.mxu0 %v393
    %421 = vmatprep.subr.mxu0 0.0
    %422 = vmatpush1.msra.mxu0 %v394
    %423 = vmatprep.subr.mxu0 0.0
    %424 = vmatpush1.msra.mxu0 %v395
    %425 = vmatprep.subr.mxu0 0.0
    %426 = vmatpush1.msra.mxu0 %v396
    %427 = vmatprep.subr.mxu0 0.0
    %428 = vmatpush1.msra.mxu0 %v397
    %429 = vmatprep.subr.mxu0 0.0
    %430 = vmatpush1.msra.mxu0 %v398
    %431 = vmatprep.subr.mxu0 0.0
    %432 = vmatpush1.msra.mxu0 %v399
    %433 = vmatprep.subr.mxu0 0.0
    %434 = vmatpush1.msra.mxu0 %v400
    %435 = vmatprep.subr.mxu0 0.0
    %436 = vmatpush1.msra.mxu0 %v401
    %437 = vmatprep.subr.mxu0 0.0
    %438 = vmatpush1.msra.mxu0 %v402
    %439 = vmatprep.subr.mxu0 0.0
    %440 = vmatpush1.msra.mxu0 %v403
    %441 = vmatprep.subr.mxu0 0.0
    %442 = vmatpush1.msra.mxu0 0.0
    %443 = vmatprep.subr.mxu0 0.0
    %444 = vmatpush1.msra.mxu0 0.0
    %445 = vmatprep.subr.mxu0 0.0
    %446 = vmatpush1.msra.mxu0 0.0
    %447 = vmatprep.subr.mxu0 0.0
    %448 = vmatpush1.msra.mxu0 0.0
    %449 = vmatprep.subr.mxu0 0.0
    %450 = vmatpush1.msra.mxu0 0.0
    %451 = vmatprep.subr.mxu0 0.0
    %452 = vmatpush1.msra.mxu0 0.0
    %453 = vmatprep.subr.mxu0 0.0
    %454 = vmatpush1.msra.mxu0 0.0
    %455 = vmatprep.subr.mxu0 0.0
    %456 = vmatpush1.msra.mxu0 0.0
    %457 = vmatprep.subr.mxu0 0.0
    %458 = vmatpush1.msra.mxu0 0.0
    %459 = vmatprep.subr.mxu0 0.0
    %460 = vmatpush1.msra.mxu0 0.0
    %461 = vmatprep.subr.mxu0 0.0
    %462 = vmatpush1.msra.mxu0 0.0
    %463 = vmatprep.subr.mxu0 0.0
    %464 = vmatpush1.msra.mxu0 0.0
    %465 = vmatprep.subr.mxu0 0.0
    %466 = vmatpush1.msra.mxu0 0.0
    %467 = vmatprep.subr.mxu0 0.0
    %468 = vmatpush1.msra.mxu0 0.0
    %469 = vmatprep.subr.mxu0 0.0
    %470 = vmatpush1.msra.mxu0 0.0
    %471 = vmatprep.subr.mxu0 0.0
    %472 = vmatpush1.msra.mxu0 0.0
    %473 = vmatprep.mubr.f32.mxu0 0.0
    %474 = vmatmul.mubr.f32.gmra.mrb[0].mxu0 %v380
    %v475 = vpop.f32.mrb[0].mxu0
    %v476 = vadd.f32 %v408, %v475
    %v477 = vpop.f32.mrb[0].mxu0
    %478 = vmatprep.mubr.f32.mxu0 0.0
    %479 = vmatmul.mubr.f32.gmra.mrb[0].mxu0 %v385
    %v480 = vpop.f32.mrb[0].mxu0
    %v481 = vadd.f32 %v408, %v480
    %v482 = vpop.f32.mrb[0].mxu0
    %483 = vdwg.mxu0
    %v484 = vld [vmem:[#allocation7 + $0x9] sm:$0x1]
    %v485 = vlaneseq
    %v486 = vshrl.u32 %v485, 7
    %v487 = vsub.s32 0, %v486
    %v488 = vrot.slane %v484, %v487
    %v489 = vadd.f32 %v476, %v488
    %v490 = vadd.f32 %v481, %v488
    %v491 = vtanh.pop %v489
    %v492 = vtanh.pop %v490
    %v493 = vld [vmem:[#allocation7 + $0xa] sm:$0x1]
    %v494 = vlaneseq
    %v495 = vshrl.u32 %v494, 7
    %v496 = vsub.s32 0, %v495
    %v497 = vrot.slane %v493, %v496
    %v498 = vmul.f32 %v491, %v497
    %v499 = vmul.f32 %v492, %v497
    %v500 = vld [vmem:[#allocation7 + $0xb] sm:$0x1]
    %v501 = vlaneseq
    %v502 = vshrl.u32 %v501, 7
    %v503 = vsub.s32 0, %v502
    %v504 = vrot.slane %v500, %v503
    %v505 = vsub.f32 %v498, %v504
    %v506 = vsub.f32 %v499, %v504
    %v507 = vround.ne.pseudo %v505
    %v508 = vround.ne.pseudo %v506
    %v509 = vld [vmem:[#allocation7 + $0xc] sm:$0x1]
    %v510 = vlaneseq
    %v511 = vshrl.u32 %v510, 7
    %v512 = vsub.s32 0, %v511
    %v513 = vrot.slane %v509, %v512
    %v514 = vmul.f32 %v507, %v513
    %v515 = vmul.f32 %v508, %v513
    %v516 = vld [vmem:[#allocation5 + $0x280] sm:$0xff]
    %v517 = vld [vmem:[#allocation5 + $0x288] sm:$0xff]
    %v518 = vld [vmem:[#allocation5 + $0x290] sm:$0xff]
    %v519 = vld [vmem:[#allocation5 + $0x298] sm:$0xff]
    %v520 = vld [vmem:[#allocation5 + $0x2a0] sm:$0xff]
    %v521 = vld [vmem:[#allocation5 + $0x2a8] sm:$0xff]
    %v522 = vld [vmem:[#allocation5 + $0x2b0] sm:$0xff]
    %v523 = vld [vmem:[#allocation5 + $0x2b8] sm:$0xff]
    %v524 = vld [vmem:[#allocation5 + $0x2c0] sm:$0xff]
    %v525 = vld [vmem:[#allocation5 + $0x2c8] sm:$0xff]
    %v526 = vld [vmem:[#allocation5 + $0x2d0] sm:$0xff]
    %v527 = vld [vmem:[#allocation5 + $0x2d8] sm:$0xff]
    %v528 = vld [vmem:[#allocation5 + $0x2e0] sm:$0xff]
    %v529 = vld [vmem:[#allocation5 + $0x2e8] sm:$0xff]
    %v530 = vld [vmem:[#allocation5 + $0x2f0] sm:$0xff]
    %v531 = vld [vmem:[#allocation5 + $0x2f8] sm:$0xff]
    %v532 = vld [vmem:[#allocation7 + $0x4] sm:$0x1]
    %v533 = vlaneseq
    %v534 = vshrl.u32 %v533, 7
    %v535 = vsub.s32 0, %v534
    %v536 = vrot.slane %v532, %v535
    %537 = vmatprep.subr.mxu0 0.0
    %538 = vmatpush1.msra.mxu0 %v516
    %539 = vmatprep.subr.mxu0 0.0
    %540 = vmatpush1.msra.mxu0 %v517
    %541 = vmatprep.subr.mxu0 0.0
    %542 = vmatpush1.msra.mxu0 %v518
    %543 = vmatprep.subr.mxu0 0.0
    %544 = vmatpush1.msra.mxu0 %v519
    %545 = vmatprep.subr.mxu0 0.0
    %546 = vmatpush1.msra.mxu0 %v520
    %547 = vmatprep.subr.mxu0 0.0
    %548 = vmatpush1.msra.mxu0 %v521
    %549 = vmatprep.subr.mxu0 0.0
    %550 = vmatpush1.msra.mxu0 %v522
    %551 = vmatprep.subr.mxu0 0.0
    %552 = vmatpush1.msra.mxu0 %v523
    %553 = vmatprep.subr.mxu0 0.0
    %554 = vmatpush1.msra.mxu0 %v524
    %555 = vmatprep.subr.mxu0 0.0
    %556 = vmatpush1.msra.mxu0 %v525
    %557 = vmatprep.subr.mxu0 0.0
    %558 = vmatpush1.msra.mxu0 %v526
    %559 = vmatprep.subr.mxu0 0.0
    %560 = vmatpush1.msra.mxu0 %v527
    %561 = vmatprep.subr.mxu0 0.0
    %562 = vmatpush1.msra.mxu0 %v528
    %563 = vmatprep.subr.mxu0 0.0
    %564 = vmatpush1.msra.mxu0 %v529
    %565 = vmatprep.subr.mxu0 0.0
    %566 = vmatpush1.msra.mxu0 %v530
    %567 = vmatprep.subr.mxu0 0.0
    %568 = vmatpush1.msra.mxu0 %v531
    %569 = vmatprep.subr.mxu0 0.0
    %570 = vmatpush1.msra.mxu0 0.0
    %571 = vmatprep.subr.mxu0 0.0
    %572 = vmatpush1.msra.mxu0 0.0
    %573 = vmatprep.subr.mxu0 0.0
    %574 = vmatpush1.msra.mxu0 0.0
    %575 = vmatprep.subr.mxu0 0.0
    %576 = vmatpush1.msra.mxu0 0.0
    %577 = vmatprep.subr.mxu0 0.0
    %578 = vmatpush1.msra.mxu0 0.0
    %579 = vmatprep.subr.mxu0 0.0
    %580 = vmatpush1.msra.mxu0 0.0
    %581 = vmatprep.subr.mxu0 0.0
    %582 = vmatpush1.msra.mxu0 0.0
    %583 = vmatprep.subr.mxu0 0.0
    %584 = vmatpush1.msra.mxu0 0.0
    %585 = vmatprep.subr.mxu0 0.0
    %586 = vmatpush1.msra.mxu0 0.0
    %587 = vmatprep.subr.mxu0 0.0
    %588 = vmatpush1.msra.mxu0 0.0
    %589 = vmatprep.subr.mxu0 0.0
    %590 = vmatpush1.msra.mxu0 0.0
    %591 = vmatprep.subr.mxu0 0.0
    %592 = vmatpush1.msra.mxu0 0.0
    %593 = vmatprep.subr.mxu0 0.0
    %594 = vmatpush1.msra.mxu0 0.0
    %595 = vmatprep.subr.mxu0 0.0
    %596 = vmatpush1.msra.mxu0 0.0
    %597 = vmatprep.subr.mxu0 0.0
    %598 = vmatpush1.msra.mxu0 0.0
    %599 = vmatprep.subr.mxu0 0.0
    %600 = vmatpush1.msra.mxu0 0.0
    %601 = vmatprep.mubr.f32.mxu0 0.0
    %602 = vmatmul.mubr.f32.gmra.mrb[0].mxu0 %v514
    %v603 = vpop.f32.mrb[0].mxu0
    %v604 = vadd.f32 %v536, %v603
    %v605 = vpop.f32.mrb[0].mxu0
    %606 = vmatprep.mubr.f32.mxu0 0.0
    %607 = vmatmul.mubr.f32.gmra.mrb[0].mxu0 %v515
    %v608 = vpop.f32.mrb[0].mxu0
    %v609 = vadd.f32 %v536, %v608
    %v610 = vpop.f32.mrb[0].mxu0
    %611 = vdwg.mxu0
    %v612 = vld [vmem:[#allocation5 + $0x300] sm:$0xff]
    %v613 = vld [vmem:[#allocation5 + $0x308] sm:$0xff]
    %v614 = vld [vmem:[#allocation5 + $0x310] sm:$0xff]
    %v615 = vld [vmem:[#allocation5 + $0x318] sm:$0xff]
    %v616 = vld [vmem:[#allocation5 + $0x320] sm:$0xff]
    %v617 = vld [vmem:[#allocation5 + $0x328] sm:$0xff]
    %v618 = vld [vmem:[#allocation5 + $0x330] sm:$0xff]
    %v619 = vld [vmem:[#allocation5 + $0x338] sm:$0xff]
    %v620 = vld [vmem:[#allocation5 + $0x340] sm:$0xff]
    %v621 = vld [vmem:[#allocation5 + $0x348] sm:$0xff]
    %v622 = vld [vmem:[#allocation5 + $0x350] sm:$0xff]
    %v623 = vld [vmem:[#allocation5 + $0x358] sm:$0xff]
    %v624 = vld [vmem:[#allocation5 + $0x360] sm:$0xff]
    %v625 = vld [vmem:[#allocation5 + $0x368] sm:$0xff]
    %v626 = vld [vmem:[#allocation5 + $0x370] sm:$0xff]
    %v627 = vld [vmem:[#allocation5 + $0x378] sm:$0xff]
    %v628 = vld [vmem:[#allocation5 + $0x380] sm:$0xff]
    %v629 = vld [vmem:[#allocation5 + $0x388] sm:$0xff]
    %v630 = vld [vmem:[#allocation5 + $0x390] sm:$0xff]
    %v631 = vld [vmem:[#allocation5 + $0x398] sm:$0xff]
    %v632 = vld [vmem:[#allocation5 + $0x3a0] sm:$0xff]
    %v633 = vld [vmem:[#allocation5 + $0x3a8] sm:$0xff]
    %v634 = vld [vmem:[#allocation5 + $0x3b0] sm:$0xff]
    %v635 = vld [vmem:[#allocation5 + $0x3b8] sm:$0xff]
    %v636 = vld [vmem:[#allocation5 + $0x3c0] sm:$0xff]
    %v637 = vld [vmem:[#allocation5 + $0x3c8] sm:$0xff]
    %v638 = vld [vmem:[#allocation5 + $0x3d0] sm:$0xff]
    %v639 = vld [vmem:[#allocation5 + $0x3d8] sm:$0xff]
    %v640 = vld [vmem:[#allocation5 + $0x3e0] sm:$0xff]
    %v641 = vld [vmem:[#allocation5 + $0x3e8] sm:$0xff]
    %v642 = vld [vmem:[#allocation5 + $0x3f0] sm:$0xff]
    %v643 = vld [vmem:[#allocation5 + $0x3f8] sm:$0xff]
    %v644 = vld [vmem:[#allocation7 + $0x5] sm:$0x1]
    %v645 = vlaneseq
    %v646 = vshrl.u32 %v645, 7
    %v647 = vsub.s32 0, %v646
    %v648 = vrot.slane %v644, %v647
    %649 = vmatprep.subr.mxu0 0.0
    %650 = vmatpush1.msra.mxu0 %v612
    %651 = vmatprep.subr.mxu0 0.0
    %652 = vmatpush1.msra.mxu0 %v613
    %653 = vmatprep.subr.mxu0 0.0
    %654 = vmatpush1.msra.mxu0 %v614
    %655 = vmatprep.subr.mxu0 0.0
    %656 = vmatpush1.msra.mxu0 %v615
    %657 = vmatprep.subr.mxu0 0.0
    %658 = vmatpush1.msra.mxu0 %v616
    %659 = vmatprep.subr.mxu0 0.0
    %660 = vmatpush1.msra.mxu0 %v617
    %661 = vmatprep.subr.mxu0 0.0
    %662 = vmatpush1.msra.mxu0 %v618
    %663 = vmatprep.subr.mxu0 0.0
    %664 = vmatpush1.msra.mxu0 %v619
    %665 = vmatprep.subr.mxu0 0.0
    %666 = vmatpush1.msra.mxu0 %v620
    %667 = vmatprep.subr.mxu0 0.0
    %668 = vmatpush1.msra.mxu0 %v621
    %669 = vmatprep.subr.mxu0 0.0
    %670 = vmatpush1.msra.mxu0 %v622
    %671 = vmatprep.subr.mxu0 0.0
    %672 = vmatpush1.msra.mxu0 %v623
    %673 = vmatprep.subr.mxu0 0.0
    %674 = vmatpush1.msra.mxu0 %v624
    %675 = vmatprep.subr.mxu0 0.0
    %676 = vmatpush1.msra.mxu0 %v625
    %677 = vmatprep.subr.mxu0 0.0
    %678 = vmatpush1.msra.mxu0 %v626
    %679 = vmatprep.subr.mxu0 0.0
    %680 = vmatpush1.msra.mxu0 %v627
    %681 = vmatprep.subr.mxu0 0.0
    %682 = vmatpush1.msra.mxu0 %v628
    %683 = vmatprep.subr.mxu0 0.0
    %684 = vmatpush1.msra.mxu0 %v629
    %685 = vmatprep.subr.mxu0 0.0
    %686 = vmatpush1.msra.mxu0 %v630
    %687 = vmatprep.subr.mxu0 0.0
    %688 = vmatpush1.msra.mxu0 %v631
    %689 = vmatprep.subr.mxu0 0.0
    %690 = vmatpush1.msra.mxu0 %v632
    %691 = vmatprep.subr.mxu0 0.0
    %692 = vmatpush1.msra.mxu0 %v633
    %693 = vmatprep.subr.mxu0 0.0
    %694 = vmatpush1.msra.mxu0 %v634
    %695 = vmatprep.subr.mxu0 0.0
    %696 = vmatpush1.msra.mxu0 %v635
    %697 = vmatprep.subr.mxu0 0.0
    %698 = vmatpush1.msra.mxu0 %v636
    %699 = vmatprep.subr.mxu0 0.0
    %700 = vmatpush1.msra.mxu0 %v637
    %701 = vmatprep.subr.mxu0 0.0
    %702 = vmatpush1.msra.mxu0 %v638
    %703 = vmatprep.subr.mxu0 0.0
    %704 = vmatpush1.msra.mxu0 %v639
    %705 = vmatprep.subr.mxu0 0.0
    %706 = vmatpush1.msra.mxu0 %v640
    %707 = vmatprep.subr.mxu0 0.0
    %708 = vmatpush1.msra.mxu0 %v641
    %709 = vmatprep.subr.mxu0 0.0
    %710 = vmatpush1.msra.mxu0 %v642
    %711 = vmatprep.subr.mxu0 0.0
    %712 = vmatpush1.msra.mxu0 %v643
    %713 = vmatprep.mubr.f32.mxu0 %v57
    %714 = vmatmul.mubr.f32.gmra.mrb[0].mxu0 %v56
    %v715 = vpop.f32.mrb[0].mxu0
    %v716 = vadd.f32 %v648, %v715
    %v717 = vpop.f32.mrb[0].mxu0
    %718 = vmatprep.mubr.f32.mxu0 %v59
    %719 = vmatmul.mubr.f32.gmra.mrb[0].mxu0 %v58
    %v720 = vpop.f32.mrb[0].mxu0
    %v721 = vadd.f32 %v648, %v720
    %v722 = vpop.f32.mrb[0].mxu0
    %723 = vdwg.mxu0
    %vm724 = vcmp.gt.f32.partialorder %v716, 0.0
    %vm725 = vcmp.gt.f32.partialorder %v721, 0.0
    %v726 = vmin.f32 %v716, 0.0
    %v727 = vmin.f32 %v721, 0.0
    %v728 = vmul.f32 %v726, 1.442695
    %v729 = vpow.pop %v728
    %v730 = vmul.f32 %v727, 1.442695
    %v731 = vpow.pop %v730
    %v732 = vsub.f32 %v729, 1.0
    %v733 = vsub.f32 %v731, 1.0
    %v734 = vsel %vm724, %v716, %v732
    %v735 = vsel %vm725, %v721, %v733
    %v736 = vld [vmem:[#allocation5 + $0x400] sm:$0xff]
    %v737 = vld [vmem:[#allocation5 + $0x408] sm:$0xff]
    %v738 = vld [vmem:[#allocation5 + $0x410] sm:$0xff]
    %v739 = vld [vmem:[#allocation5 + $0x418] sm:$0xff]
    %v740 = vld [vmem:[#allocation5 + $0x420] sm:$0xff]
    %v741 = vld [vmem:[#allocation5 + $0x428] sm:$0xff]
    %v742 = vld [vmem:[#allocation5 + $0x430] sm:$0xff]
    %v743 = vld [vmem:[#allocation5 + $0x438] sm:$0xff]
    %v744 = vld [vmem:[#allocation5 + $0x440] sm:$0xff]
    %v745 = vld [vmem:[#allocation5 + $0x448] sm:$0xff]
    %v746 = vld [vmem:[#allocation5 + $0x450] sm:$0xff]
    %v747 = vld [vmem:[#allocation5 + $0x458] sm:$0xff]
    %v748 = vld [vmem:[#allocation5 + $0x460] sm:$0xff]
    %v749 = vld [vmem:[#allocation5 + $0x468] sm:$0xff]
    %v750 = vld [vmem:[#allocation5 + $0x470] sm:$0xff]
    %v751 = vld [vmem:[#allocation5 + $0x478] sm:$0xff]
    %v752 = vld [vmem:[#allocation5 + $0x480] sm:$0xff]
    %v753 = vld [vmem:[#allocation5 + $0x488] sm:$0xff]
    %v754 = vld [vmem:[#allocation5 + $0x490] sm:$0xff]
    %v755 = vld [vmem:[#allocation5 + $0x498] sm:$0xff]
    %v756 = vld [vmem:[#allocation5 + $0x4a0] sm:$0xff]
    %v757 = vld [vmem:[#allocation5 + $0x4a8] sm:$0xff]
    %v758 = vld [vmem:[#allocation5 + $0x4b0] sm:$0xff]
    %v759 = vld [vmem:[#allocation5 + $0x4b8] sm:$0xff]
    %v760 = vld [vmem:[#allocation5 + $0x4c0] sm:$0xff]
    %v761 = vld [vmem:[#allocation5 + $0x4c8] sm:$0xff]
    %v762 = vld [vmem:[#allocation5 + $0x4d0] sm:$0xff]
    %v763 = vld [vmem:[#allocation5 + $0x4d8] sm:$0xff]
    %v764 = vld [vmem:[#allocation5 + $0x4e0] sm:$0xff]
    %v765 = vld [vmem:[#allocation5 + $0x4e8] sm:$0xff]
    %v766 = vld [vmem:[#allocation5 + $0x4f0] sm:$0xff]
    %v767 = vld [vmem:[#allocation5 + $0x4f8] sm:$0xff]
    %768 = vmatprep.subr.mxu0 0.0
    %769 = vmatpush1.msra.mxu0 %v752
    %770 = vmatprep.subr.mxu0 0.0
    %771 = vmatpush1.msra.mxu0 %v753
    %772 = vmatprep.subr.mxu0 0.0
    %773 = vmatpush1.msra.mxu0 %v754
    %774 = vmatprep.subr.mxu0 0.0
    %775 = vmatpush1.msra.mxu0 %v755
    %776 = vmatprep.subr.mxu0 0.0
    %777 = vmatpush1.msra.mxu0 %v756
    %778 = vmatprep.subr.mxu0 0.0
    %779 = vmatpush1.msra.mxu0 %v757
    %780 = vmatprep.subr.mxu0 0.0
    %781 = vmatpush1.msra.mxu0 %v758
    %782 = vmatprep.subr.mxu0 0.0
    %783 = vmatpush1.msra.mxu0 %v759
    %784 = vmatprep.subr.mxu0 0.0
    %785 = vmatpush1.msra.mxu0 %v760
    %786 = vmatprep.subr.mxu0 0.0
    %787 = vmatpush1.msra.mxu0 %v761
    %788 = vmatprep.subr.mxu0 0.0
    %789 = vmatpush1.msra.mxu0 %v762
    %790 = vmatprep.subr.mxu0 0.0
    %791 = vmatpush1.msra.mxu0 %v763
    %792 = vmatprep.subr.mxu0 0.0
    %793 = vmatpush1.msra.mxu0 %v764
    %794 = vmatprep.subr.mxu0 0.0
    %795 = vmatpush1.msra.mxu0 %v765
    %796 = vmatprep.subr.mxu0 0.0
    %797 = vmatpush1.msra.mxu0 %v766
    %798 = vmatprep.subr.mxu0 0.0
    %799 = vmatpush1.msra.mxu0 %v767
    %800 = vmatprep.subr.mxu0 0.0
    %801 = vmatpush1.msra.mxu0 0.0
    %802 = vmatprep.subr.mxu0 0.0
    %803 = vmatpush1.msra.mxu0 0.0
    %804 = vmatprep.subr.mxu0 0.0
    %805 = vmatpush1.msra.mxu0 0.0
    %806 = vmatprep.subr.mxu0 0.0
    %807 = vmatpush1.msra.mxu0 0.0
    %808 = vmatprep.subr.mxu0 0.0
    %809 = vmatpush1.msra.mxu0 0.0
    %810 = vmatprep.subr.mxu0 0.0
    %811 = vmatpush1.msra.mxu0 0.0
    %812 = vmatprep.subr.mxu0 0.0
    %813 = vmatpush1.msra.mxu0 0.0
    %814 = vmatprep.subr.mxu0 0.0
    %815 = vmatpush1.msra.mxu0 0.0
    %816 = vmatprep.subr.mxu0 0.0
    %817 = vmatpush1.msra.mxu0 0.0
    %818 = vmatprep.subr.mxu0 0.0
    %819 = vmatpush1.msra.mxu0 0.0
    %820 = vmatprep.subr.mxu0 0.0
    %821 = vmatpush1.msra.mxu0 0.0
    %822 = vmatprep.subr.mxu0 0.0
    %823 = vmatpush1.msra.mxu0 0.0
    %824 = vmatprep.subr.mxu0 0.0
    %825 = vmatpush1.msra.mxu0 0.0
    %826 = vmatprep.subr.mxu0 0.0
    %827 = vmatpush1.msra.mxu0 0.0
    %828 = vmatprep.subr.mxu0 0.0
    %829 = vmatpush1.msra.mxu0 0.0
    %830 = vmatprep.subr.mxu0 0.0
    %831 = vmatpush1.msra.mxu0 0.0
    %832 = vmatprep.mubr.f32.mxu0 0.0
    %833 = vmatmul.mubr.f32.gmra.mrb[0].mxu0 %v734
    %v834 = vpop.f32.mrb[0].mxu0
    %v835 = vadd.f32 0.0, %v834
    %v836 = vpop.f32.mrb[0].mxu0
    %837 = vmatprep.mubr.f32.mxu0 0.0
    %838 = vmatmul.mubr.f32.gmra.mrb[0].mxu0 %v735
    %v839 = vpop.f32.mrb[0].mxu0
    %v840 = vadd.f32 0.0, %v839
    %v841 = vpop.f32.mrb[0].mxu0
    %842 = vdwg.mxu0
    %843 = vmatprep.subr.mxu0 0.0
    %844 = vmatpush1.msra.mxu0 %v736
    %845 = vmatprep.subr.mxu0 0.0
    %846 = vmatpush1.msra.mxu0 %v737
    %847 = vmatprep.subr.mxu0 0.0
    %848 = vmatpush1.msra.mxu0 %v738
    %849 = vmatprep.subr.mxu0 0.0
    %850 = vmatpush1.msra.mxu0 %v739
    %851 = vmatprep.subr.mxu0 0.0
    %852 = vmatpush1.msra.mxu0 %v740
    %853 = vmatprep.subr.mxu0 0.0
    %854 = vmatpush1.msra.mxu0 %v741
    %855 = vmatprep.subr.mxu0 0.0
    %856 = vmatpush1.msra.mxu0 %v742
    %857 = vmatprep.subr.mxu0 0.0
    %858 = vmatpush1.msra.mxu0 %v743
    %859 = vmatprep.subr.mxu0 0.0
    %860 = vmatpush1.msra.mxu0 %v744
    %861 = vmatprep.subr.mxu0 0.0
    %862 = vmatpush1.msra.mxu0 %v745
    %863 = vmatprep.subr.mxu0 0.0
    %864 = vmatpush1.msra.mxu0 %v746
    %865 = vmatprep.subr.mxu0 0.0
    %866 = vmatpush1.msra.mxu0 %v747
    %867 = vmatprep.subr.mxu0 0.0
    %868 = vmatpush1.msra.mxu0 %v748
    %869 = vmatprep.subr.mxu0 0.0
    %870 = vmatpush1.msra.mxu0 %v749
    %871 = vmatprep.subr.mxu0 0.0
    %872 = vmatpush1.msra.mxu0 %v750
    %873 = vmatprep.subr.mxu0 0.0
    %874 = vmatpush1.msra.mxu0 %v751
    %875 = vmatprep.subr.mxu0 0.0
    %876 = vmatpush1.msra.mxu0 0.0
    %877 = vmatprep.subr.mxu0 0.0
    %878 = vmatpush1.msra.mxu0 0.0
    %879 = vmatprep.subr.mxu0 0.0
    %880 = vmatpush1.msra.mxu0 0.0
    %881 = vmatprep.subr.mxu0 0.0
    %882 = vmatpush1.msra.mxu0 0.0
    %883 = vmatprep.subr.mxu0 0.0
    %884 = vmatpush1.msra.mxu0 0.0
    %885 = vmatprep.subr.mxu0 0.0
    %886 = vmatpush1.msra.mxu0 0.0
    %887 = vmatprep.subr.mxu0 0.0
    %888 = vmatpush1.msra.mxu0 0.0
    %889 = vmatprep.subr.mxu0 0.0
    %890 = vmatpush1.msra.mxu0 0.0
    %891 = vmatprep.subr.mxu0 0.0
    %892 = vmatpush1.msra.mxu0 0.0
    %893 = vmatprep.subr.mxu0 0.0
    %894 = vmatpush1.msra.mxu0 0.0
    %895 = vmatprep.subr.mxu0 0.0
    %896 = vmatpush1.msra.mxu0 0.0
    %897 = vmatprep.subr.mxu0 0.0
    %898 = vmatpush1.msra.mxu0 0.0
    %899 = vmatprep.subr.mxu0 0.0
    %900 = vmatpush1.msra.mxu0 0.0
    %901 = vmatprep.subr.mxu0 0.0
    %902 = vmatpush1.msra.mxu0 0.0
    %903 = vmatprep.subr.mxu0 0.0
    %904 = vmatpush1.msra.mxu0 0.0
    %905 = vmatprep.subr.mxu0 0.0
    %906 = vmatpush1.msra.mxu0 0.0
    %907 = vmatprep.mubr.f32.mxu0 0.0
    %908 = vmatmul.mubr.f32.gmra.mrb[0].mxu0 %v604
    %v909 = vpop.f32.mrb[0].mxu0
    %v910 = vadd.f32 %v835, %v909
    %v911 = vpop.f32.mrb[0].mxu0
    %912 = vmatprep.mubr.f32.mxu0 0.0
    %913 = vmatmul.mubr.f32.gmra.mrb[0].mxu0 %v609
    %v914 = vpop.f32.mrb[0].mxu0
    %v915 = vadd.f32 %v840, %v914
    %v916 = vpop.f32.mrb[0].mxu0
    %917 = vdwg.mxu0
    %v918 = vld [vmem:[#allocation7 + $0x6] sm:$0x1]
    %v919 = vlaneseq
    %v920 = vshrl.u32 %v919, 7
    %v921 = vsub.s32 0, %v920
    %v922 = vrot.slane %v918, %v921
    %v923 = vadd.f32 %v910, %v922
    %v924 = vadd.f32 %v915, %v922
    %vm925 = vcmp.gt.f32.partialorder %v923, 0.0
    %vm926 = vcmp.gt.f32.partialorder %v924, 0.0
    %v927 = vmin.f32 %v923, 0.0
    %v928 = vmin.f32 %v924, 0.0
    %v929 = vmul.f32 %v927, 1.442695
    %v930 = vpow.pop %v929
    %v931 = vmul.f32 %v928, 1.442695
    %v932 = vpow.pop %v931
    %v933 = vsub.f32 %v930, 1.0
    %v934 = vsub.f32 %v932, 1.0
    %v935 = vsel %vm925, %v923, %v933
    %v936 = vsel %vm926, %v924, %v934
    %v937 = vld [vmem:[#allocation5 + $0x500] sm:$0xff]
    %v938 = vld [vmem:[#allocation5 + $0x508] sm:$0xff]
    %v939 = vld [vmem:[#allocation5 + $0x510] sm:$0xff]
    %v940 = vld [vmem:[#allocation5 + $0x518] sm:$0xff]
    %v941 = vld [vmem:[#allocation5 + $0x520] sm:$0xff]
    %v942 = vld [vmem:[#allocation5 + $0x528] sm:$0xff]
    %v943 = vld [vmem:[#allocation5 + $0x530] sm:$0xff]
    %v944 = vld [vmem:[#allocation5 + $0x538] sm:$0xff]
    %v945 = vld [vmem:[#allocation5 + $0x540] sm:$0xff]
    %v946 = vld [vmem:[#allocation5 + $0x548] sm:$0xff]
    %v947 = vld [vmem:[#allocation5 + $0x550] sm:$0xff]
    %v948 = vld [vmem:[#allocation5 + $0x558] sm:$0xff]
    %v949 = vld [vmem:[#allocation5 + $0x560] sm:$0xff]
    %v950 = vld [vmem:[#allocation5 + $0x568] sm:$0xff]
    %v951 = vld [vmem:[#allocation5 + $0x570] sm:$0xff]
    %v952 = vld [vmem:[#allocation5 + $0x578] sm:$0xff]
    %v953 = vld [vmem:[#allocation7 + $0x7] sm:$0x1]
    %v954 = vlaneseq
    %v955 = vshrl.u32 %v954, 7
    %v956 = vsub.s32 0, %v955
    %v957 = vrot.slane %v953, %v956
    %958 = vmatprep.subr.mxu0 0.0
    %959 = vmatpush1.msra.mxu0 %v937
    %960 = vmatprep.subr.mxu0 0.0
    %961 = vmatpush1.msra.mxu0 %v938
    %962 = vmatprep.subr.mxu0 0.0
    %963 = vmatpush1.msra.mxu0 %v939
    %964 = vmatprep.subr.mxu0 0.0
    %965 = vmatpush1.msra.mxu0 %v940
    %966 = vmatprep.subr.mxu0 0.0
    %967 = vmatpush1.msra.mxu0 %v941
    %968 = vmatprep.subr.mxu0 0.0
    %969 = vmatpush1.msra.mxu0 %v942
    %970 = vmatprep.subr.mxu0 0.0
    %971 = vmatpush1.msra.mxu0 %v943
    %972 = vmatprep.subr.mxu0 0.0
    %973 = vmatpush1.msra.mxu0 %v944
    %974 = vmatprep.subr.mxu0 0.0
    %975 = vmatpush1.msra.mxu0 %v945
    %976 = vmatprep.subr.mxu0 0.0
    %977 = vmatpush1.msra.mxu0 %v946
    %978 = vmatprep.subr.mxu0 0.0
    %979 = vmatpush1.msra.mxu0 %v947
    %980 = vmatprep.subr.mxu0 0.0
    %981 = vmatpush1.msra.mxu0 %v948
    %982 = vmatprep.subr.mxu0 0.0
    %983 = vmatpush1.msra.mxu0 %v949
    %984 = vmatprep.subr.mxu0 0.0
    %985 = vmatpush1.msra.mxu0 %v950
    %986 = vmatprep.subr.mxu0 0.0
    %987 = vmatpush1.msra.mxu0 %v951
    %988 = vmatprep.subr.mxu0 0.0
    %989 = vmatpush1.msra.mxu0 %v952
    %990 = vmatprep.subr.mxu0 0.0
    %991 = vmatpush1.msra.mxu0 0.0
    %992 = vmatprep.subr.mxu0 0.0
    %993 = vmatpush1.msra.mxu0 0.0
    %994 = vmatprep.subr.mxu0 0.0
    %995 = vmatpush1.msra.mxu0 0.0
    %996 = vmatprep.subr.mxu0 0.0
    %997 = vmatpush1.msra.mxu0 0.0
    %998 = vmatprep.subr.mxu0 0.0
    %999 = vmatpush1.msra.mxu0 0.0
    %1000 = vmatprep.subr.mxu0 0.0
    %1001 = vmatpush1.msra.mxu0 0.0
    %1002 = vmatprep.subr.mxu0 0.0
    %1003 = vmatpush1.msra.mxu0 0.0
    %1004 = vmatprep.subr.mxu0 0.0
    %1005 = vmatpush1.msra.mxu0 0.0
    %1006 = vmatprep.subr.mxu0 0.0
    %1007 = vmatpush1.msra.mxu0 0.0
    %1008 = vmatprep.subr.mxu0 0.0
    %1009 = vmatpush1.msra.mxu0 0.0
    %1010 = vmatprep.subr.mxu0 0.0
    %1011 = vmatpush1.msra.mxu0 0.0
    %1012 = vmatprep.subr.mxu0 0.0
    %1013 = vmatpush1.msra.mxu0 0.0
    %1014 = vmatprep.subr.mxu0 0.0
    %1015 = vmatpush1.msra.mxu0 0.0
    %1016 = vmatprep.subr.mxu0 0.0
    %1017 = vmatpush1.msra.mxu0 0.0
    %1018 = vmatprep.subr.mxu0 0.0
    %1019 = vmatpush1.msra.mxu0 0.0
    %1020 = vmatprep.subr.mxu0 0.0
    %1021 = vmatpush1.msra.mxu0 0.0
    %1022 = vmatprep.mubr.f32.mxu0 0.0
    %1023 = vmatmul.mubr.f32.gmra.mrb[0].mxu0 %v935
    %v1024 = vpop.f32.mrb[0].mxu0
    %v1025 = vadd.f32 %v957, %v1024
    %v1026 = vpop.f32.mrb[0].mxu0
    %1027 = vmatprep.mubr.f32.mxu0 0.0
    %1028 = vmatmul.mubr.f32.gmra.mrb[0].mxu0 %v936
    %v1029 = vpop.f32.mrb[0].mxu0
    %v1030 = vadd.f32 %v957, %v1029
    %v1031 = vpop.f32.mrb[0].mxu0
    %1032 = vdwg.mxu0
    %vm1033 = vcmp.gt.f32.partialorder %v1025, 0.0
    %vm1034 = vcmp.gt.f32.partialorder %v1030, 0.0
    %v1035 = vmin.f32 %v1025, 0.0
    %v1036 = vmin.f32 %v1030, 0.0
    %v1037 = vmul.f32 %v1035, 1.442695
    %v1038 = vpow.pop %v1037
    %v1039 = vmul.f32 %v1036, 1.442695
    %v1040 = vpow.pop %v1039
    %v1041 = vsub.f32 %v1038, 1.0
    %v1042 = vsub.f32 %v1040, 1.0
    %v1043 = vsel %vm1033, %v1025, %v1041
    %v1044 = vsel %vm1034, %v1030, %v1042
    %v1045 = vld [vmem:[#allocation5 + $0x580] sm:$0xff]
    %v1046 = vld [vmem:[#allocation5 + $0x588] sm:$0xff]
    %v1047 = vld [vmem:[#allocation5 + $0x590] sm:$0xff]
    %v1048 = vld [vmem:[#allocation5 + $0x598] sm:$0xff]
    %v1049 = vld [vmem:[#allocation5 + $0x5a0] sm:$0xff]
    %v1050 = vld [vmem:[#allocation5 + $0x5a8] sm:$0xff]
    %v1051 = vld [vmem:[#allocation5 + $0x5b0] sm:$0xff]
    %v1052 = vld [vmem:[#allocation5 + $0x5b8] sm:$0xff]
    %v1053 = vld [vmem:[#allocation5 + $0x5c0] sm:$0xff]
    %v1054 = vld [vmem:[#allocation5 + $0x5c8] sm:$0xff]
    %v1055 = vld [vmem:[#allocation5 + $0x5d0] sm:$0xff]
    %v1056 = vld [vmem:[#allocation5 + $0x5d8] sm:$0xff]
    %v1057 = vld [vmem:[#allocation5 + $0x5e0] sm:$0xff]
    %v1058 = vld [vmem:[#allocation5 + $0x5e8] sm:$0xff]
    %v1059 = vld [vmem:[#allocation5 + $0x5f0] sm:$0xff]
    %v1060 = vld [vmem:[#allocation5 + $0x5f8] sm:$0xff]
    %v1061 = vld [vmem:[#allocation7 + $0x8] sm:$0x1]
    %v1062 = vlaneseq
    %v1063 = vshrl.u32 %v1062, 7
    %v1064 = vsub.s32 0, %v1063
    %v1065 = vrot.slane %v1061, %v1064
    %1066 = vmatprep.subr.mxu0 0.0
    %1067 = vmatpush1.msra.mxu0 %v1045
    %1068 = vmatprep.subr.mxu0 0.0
    %1069 = vmatpush1.msra.mxu0 %v1046
    %1070 = vmatprep.subr.mxu0 0.0
    %1071 = vmatpush1.msra.mxu0 %v1047
    %1072 = vmatprep.subr.mxu0 0.0
    %1073 = vmatpush1.msra.mxu0 %v1048
    %1074 = vmatprep.subr.mxu0 0.0
    %1075 = vmatpush1.msra.mxu0 %v1049
    %1076 = vmatprep.subr.mxu0 0.0
    %1077 = vmatpush1.msra.mxu0 %v1050
    %1078 = vmatprep.subr.mxu0 0.0
    %1079 = vmatpush1.msra.mxu0 %v1051
    %1080 = vmatprep.subr.mxu0 0.0
    %1081 = vmatpush1.msra.mxu0 %v1052
    %1082 = vmatprep.subr.mxu0 0.0
    %1083 = vmatpush1.msra.mxu0 %v1053
    %1084 = vmatprep.subr.mxu0 0.0
    %1085 = vmatpush1.msra.mxu0 %v1054
    %1086 = vmatprep.subr.mxu0 0.0
    %1087 = vmatpush1.msra.mxu0 %v1055
    %1088 = vmatprep.subr.mxu0 0.0
    %1089 = vmatpush1.msra.mxu0 %v1056
    %1090 = vmatprep.subr.mxu0 0.0
    %1091 = vmatpush1.msra.mxu0 %v1057
    %1092 = vmatprep.subr.mxu0 0.0
    %1093 = vmatpush1.msra.mxu0 %v1058
    %1094 = vmatprep.subr.mxu0 0.0
    %1095 = vmatpush1.msra.mxu0 %v1059
    %1096 = vmatprep.subr.mxu0 0.0
    %1097 = vmatpush1.msra.mxu0 %v1060
    %1098 = vmatprep.subr.mxu0 0.0
    %1099 = vmatpush1.msra.mxu0 0.0
    %1100 = vmatprep.subr.mxu0 0.0
    %1101 = vmatpush1.msra.mxu0 0.0
    %1102 = vmatprep.subr.mxu0 0.0
    %1103 = vmatpush1.msra.mxu0 0.0
    %1104 = vmatprep.subr.mxu0 0.0
    %1105 = vmatpush1.msra.mxu0 0.0
    %1106 = vmatprep.subr.mxu0 0.0
    %1107 = vmatpush1.msra.mxu0 0.0
    %1108 = vmatprep.subr.mxu0 0.0
    %1109 = vmatpush1.msra.mxu0 0.0
    %1110 = vmatprep.subr.mxu0 0.0
    %1111 = vmatpush1.msra.mxu0 0.0
    %1112 = vmatprep.subr.mxu0 0.0
    %1113 = vmatpush1.msra.mxu0 0.0
    %1114 = vmatprep.subr.mxu0 0.0
    %1115 = vmatpush1.msra.mxu0 0.0
    %1116 = vmatprep.subr.mxu0 0.0
    %1117 = vmatpush1.msra.mxu0 0.0
    %1118 = vmatprep.subr.mxu0 0.0
    %1119 = vmatpush1.msra.mxu0 0.0
    %1120 = vmatprep.subr.mxu0 0.0
    %1121 = vmatpush1.msra.mxu0 0.0
    %1122 = vmatprep.subr.mxu0 0.0
    %1123 = vmatpush1.msra.mxu0 0.0
    %1124 = vmatprep.subr.mxu0 0.0
    %1125 = vmatpush1.msra.mxu0 0.0
    %1126 = vmatprep.subr.mxu0 0.0
    %1127 = vmatpush1.msra.mxu0 0.0
    %1128 = vmatprep.subr.mxu0 0.0
    %1129 = vmatpush1.msra.mxu0 0.0
    %1130 = vmatprep.mubr.f32.mxu0 0.0
    %1131 = vmatmul.mubr.f32.gmra.mrb[0].mxu0 %v1043
    %v1132 = vpop.f32.mrb[0].mxu0
    %v1133 = vadd.f32 %v1065, %v1132
    %v1134 = vpop.f32.mrb[0].mxu0
    %1135 = vmatprep.mubr.f32.mxu0 0.0
    %1136 = vmatmul.mubr.f32.gmra.mrb[0].mxu0 %v1044
    %v1137 = vpop.f32.mrb[0].mxu0
    %v1138 = vadd.f32 %v1065, %v1137
    %v1139 = vpop.f32.mrb[0].mxu0
    %1140 = vdwg.mxu0
    %v1141 = vadd.f32 %v1133, %v604
    %v1142 = vadd.f32 %v1138, %v609
    %1143 = vst [vmem:[#allocation8] sm:$0xff] %v1141
    %1144 = vst [vmem:[#allocation8 + $0x8] sm:$0xff] %v1142
    // Predicated region
    $region26: #{tpu_custom_call.1} parent=1 // pred_check
      _
    $region27: #{tpu_custom_call.1} parent=1 // pred_check_branch
      %1146 = sbr.rel (0) target = $region29
    $region28: #{tpu_custom_call.1} parent=1 // pred_region
      %s1148 = ssub.s32 256, 256
      %1149 = vsyncadd [#allocation4], %s1148
      %s1150 = sshll.u32 [#allocation8], 4
      %s1151 = int_to_ptr.vmem [resolvable:$true] %s1150
      %1156 = dma.vmem_to_hbm [thread:$0]  %s1151, 256, %s3, [#allocation4], 128, 128, 8
    $region29: #{tpu_custom_call.1} parent=1 // pred_fallthru
      _
    // Predicated region
    $region30: #{tpu_custom_call.1} parent=1 // pred_check
      _
    $region31: #{tpu_custom_call.1} parent=1 // pred_check_branch
      %1158 = sbr.rel (0) target = $region33
    $region32: #{tpu_custom_call.1} parent=1 // pred_region
      %1159 = dma.done [#allocation4], 256
    $region33: #{tpu_custom_call.1} parent=1 // pred_fallthru
      _
    %1160 = vsyncpa [#allocation3], 1
    %1161 = vsyncpa [#allocation6], 1
    %1162 = vsyncpa [#allocation4], 1

</llo_original>
